<compile_context>
chip_gen: v7x
topology: tpu7x:2x2x1
jax: 0.10.0
libtpu: 0.0.40
codegen_flags: <defaults>
</compile_context>

<pallas_src>
import math
import numpy as np
import jax
import jax.numpy as jnp
from jax.experimental import pallas as pl
from jax.experimental.pallas import tpu as pltpu

H = 16
W = 16
P = H * W
N_BATCH = 2
NP = N_BATCH * P          # lanes: batch folded into the flattened spatial axis
C0P = 8                   # attenuation channels 6 -> padded to 8 (sublane tile)
C1P = 16                  # conv1 channels 12 -> padded to 16
LOG3 = float(math.log(3.0))
OFFSETS = tuple((dy, dx) for dy in (-1, 0, 1) for dx in (-1, 0, 1))  # k = (dy+1)*3 + (dx+1)
CENTER = 4                # OFFSETS[4] == (0, 0)


def deatten_kernel(depth_ref, direct_ref, masks_ref, w0_ref, w1_ref, w2_ref,
                   selwb_ref, f_ref, j_ref):
    depth = depth_ref[...]                                        # (1, NP)

    def stack_taps(x):
        """x: (Cpad, NP) -> (9*Cpad, NP) of lane-shifted, border-masked 3x3 taps."""
        taps = []
        for k, (dy, dx) in enumerate(OFFSETS):
            s = dy * W + dx
            if s == 0:
                taps.append(x)                                    # center tap, mask == 1
            else:
                # y[:, p] = x[:, p + s]; wrapped / out-of-image lanes zeroed by the mask
                # (the spatial mask also covers cross-batch lane wrap).
                taps.append(jnp.roll(x, -s, axis=1) * masks_ref[k])
        return jnp.concatenate(taps, axis=0)                      # aligned sublane concat

    # attenuation_conv: 1x1 conv (1 -> 6, no bias), then exp(-relu(.)).  Padded rows
    # 6..7 have zero weight -> exp(0) == 1.0; row 6 doubles as the constant "bias
    # channel" consumed by the folded conv1 bias below.
    a0 = jnp.exp(-jnp.maximum(w0_ref[...] * depth, 0.0))          # (8, NP)

    # conv1 (3x3, 6->12) and conv2 (3x3, 12->6): one MXU contraction each.
    # Biases are already folded into the packed weights (via constant-1.0 channels),
    # so relu(dot(.)) == relu(conv(.) + b) exactly.
    h1 = jnp.maximum(
        jnp.dot(w1_ref[...], stack_taps(a0), preferred_element_type=jnp.float32),
        0.0)                                                      # (16, NP); row 12 == 1.0
    h2 = jnp.maximum(
        jnp.dot(w2_ref[...], stack_taps(h1), preferred_element_type=jnp.float32),
        0.0)                                                      # (6, NP)

    # beta for all 3 output channels at once: pairwise-sum fused with
    # relu(attenuation_coef) in a single packed (8, 6) matrix (rows 3..7 zero).
    sw = selwb_ref[...]                                           # (8, 8)
    beta = jnp.dot(sw[:, :6], h2, preferred_element_type=jnp.float32)   # (8, NP)

    f = jnp.exp(jnp.clip(beta * depth, 0.0, LOG3))                # (8, NP)
    # f * ((depth==0)/f + (depth>0))  ==  f where depth>0, 1 where depth==0, 0 otherwise.
    fm = jnp.where(depth > 0.0, f, (depth == 0.0).astype(jnp.float32))
    # sw[:, 6:7] carries wb in rows 0..2 (rows 3..7 zero -> padded rows of J are 0).
    jout = fm * direct_ref[...] * sw[:, 6:7]
    # TODO(synk): torch prints a runtime NaN warning; no Pallas equivalent (values still zeroed).
    jout = jnp.where(jnp.isnan(jout), 0.0, jout)

    f_ref[...] = fm                                               # full (8, NP) unmasked store
    j_ref[...] = jout                                             # full (8, NP) unmasked store


def init_params(key):
    k0, k1, k2, k3, k4, k5 = jax.random.split(key, 6)
    w_attn = jax.random.uniform(k0, (6, 1, 1, 1), jnp.float32, 0.0, 5.0)   # nn.init.uniform_(0, 5)
    w1 = jax.random.uniform(k1, (12, 6, 3, 3), jnp.float32, -0.1, 0.1)
    b1 = jax.random.uniform(k2, (12,), jnp.float32, -0.1, 0.1)
    w2 = jax.random.uniform(k3, (6, 12, 3, 3), jnp.float32, -0.1, 0.1)
    b2 = jax.random.uniform(k4, (6,), jnp.float32, -0.1, 0.1)
    acoef = jax.random.uniform(k5, (6, 1, 1), jnp.float32)                 # torch.rand(6,1,1)
    wb = jnp.ones((1, 1, 1), jnp.float32)                                   # init.constant_(1)
    return (w_attn, w1, b1, w2, b2, acoef, wb)


def pack_params(raw):
    """Repack weights so each conv is a single (Cout_pad, 9*Cin_pad) matmul with its
    bias folded in, and the beta epilogue is a single packed (8, 8) matrix."""
    w_attn, w1, b1, w2, b2, acoef, wb = raw

    # attenuation 1x1 weights, 6 -> 8 rows (padded rows stay 0 -> a0 rows 6,7 == 1.0).
    w0p = jnp.zeros((C0P, 1), jnp.float32).at[:6, 0].set(w_attn.reshape(6))

    # conv1: (Cout=12, Cin=6, 3, 3) -> (Cout_pad=16, 9*Cin_pad=72), column = k*8 + cin.
    w1t = jnp.transpose(w1.reshape(12, 6, 9), (0, 2, 1))                    # (12, 9, 6)
    w1p = jnp.zeros((C1P, 9, C0P), jnp.float32).at[:12, :, :6].set(w1t)
    w1p = w1p.at[:12, CENTER, 6].set(b1)      # fold b1 onto the constant-1.0 a0 channel 6
    w1p = w1p.at[12, CENTER, 6].set(1.0)      # h1 channel 12 becomes constant 1.0 (carries b2)
    w1p = w1p.reshape(C1P, 9 * C0P)

    # conv2: (Cout=6, Cin=12, 3, 3) -> (6, 9*Cin_pad=144), column = k*16 + cin.
    w2t = jnp.transpose(w2.reshape(6, 12, 9), (0, 2, 1))                    # (6, 9, 12)
    w2p = jnp.zeros((6, 9, C1P), jnp.float32).at[:, :, :12].set(w2t)
    w2p = w2p.at[:, CENTER, 12].set(b2)       # fold b2 onto the constant-1.0 h1 channel 12
    w2p = w2p.reshape(6, 9 * C1P)

    # Channel-pair selection fused with relu(attenuation_coef): beta[i] = sum over
    # c in {2i, 2i+1} of relu(acoef[c]) * h2[c].  Column 6 carries wb (rows 0..2).
    sel = np.zeros((8, 6), np.float32)
    for i in range(3):
        sel[i, 2 * i] = 1.0
        sel[i, 2 * i + 1] = 1.0
    ac = jnp.maximum(acoef.reshape(6), 0.0)
    selm = jnp.asarray(sel) * ac[None, :]                                   # (8, 6)
    wbcol = jnp.zeros((8, 2), jnp.float32).at[:3, 0].set(wb.reshape(()))    # (8, 2)
    selwb = jnp.concatenate([selm, wbcol], axis=1)                          # (8, 8)

    return (w0p, w1p, w2p, selwb)


def make_masks():
    """(9, 1, NP) per-tap validity masks over the batch-folded lane axis (padding=1)."""
    q = np.arange(NP)
    p = q % P
    hh = p // W
    ww = p % W
    m = np.zeros((9, 1, NP), np.float32)
    for k, (dy, dx) in enumerate(OFFSETS):
        ok = (hh + dy >= 0) & (hh + dy < H) & (ww + dx >= 0) & (ww + dx < W)
        m[k, 0, :] = ok.astype(np.float32)
    return jnp.asarray(m)


def deattenuate(direct, depth, packed, masks):
    n = direct.shape[0]
    assert n == N_BATCH, "kernel folds the batch into the lane axis (built for N_BATCH)"
    w0p, w1p, w2p, selwb = packed

    depth_f = depth.astype(jnp.float32).reshape(1, NP)                       # lane = n*P + h*W + w
    direct_f = jnp.zeros((8, NP), jnp.float32).at[:3].set(
        jnp.transpose(direct.astype(jnp.float32), (1, 0, 2, 3)).reshape(3, NP))

    spec2 = lambda shape: pl.BlockSpec(shape, lambda i: (0, 0))
    spec3 = lambda shape: pl.BlockSpec(shape, lambda i: (0, 0, 0))

    f_flat, j_flat = pl.pallas_call(
        deatten_kernel,
        out_shape=(jax.ShapeDtypeStruct((8, NP), jnp.float32),
                   jax.ShapeDtypeStruct((8, NP), jnp.float32)),
        grid_spec=pltpu.PrefetchScalarGridSpec(
            num_scalar_prefetch=0,
            grid=(1,),                       # whole problem in one grid step
            in_specs=[
                spec2((1, NP)),              # depth
                spec2((8, NP)),              # direct (padded to 8 sublanes)
                spec3((9, 1, NP)),           # precomputed border masks
                spec2((C0P, 1)),             # attenuation 1x1 weights (padded)
                spec2((C1P, 9 * C0P)),       # conv1 weights (+ b1 folded)
                spec2((6, 9 * C1P)),         # conv2 weights (+ b2 folded)
                spec2((8, 8)),               # sel * relu(acoef) | wb
            ],
            out_specs=[spec2((8, NP)), spec2((8, NP))],
        ),
        compiler_params=pltpu.CompilerParams(dimension_semantics=("arbitrary",)),
    )(depth_f, direct_f, masks, w0p, w1p, w2p, selwb)

    f_out = jnp.transpose(f_flat[:3].reshape(3, n, H, W), (1, 0, 2, 3))
    j_out = jnp.transpose(j_flat[:3].reshape(3, n, H, W), (1, 0, 2, 3))
    return f_out, j_out


def reference(direct, depth, raw):
    """Pure-JAX reference reproducing the PyTorch forward (NCHW)."""
    w_attn, w1, b1, w2, b2, acoef, wb = raw
    dn = ("NCHW", "OIHW", "NCHW")
    conv = lambda x, w: jax.lax.conv_general_dilated(x, w, (1, 1), "SAME",
                                                     dimension_numbers=dn)
    a0 = jnp.exp(-jax.nn.relu(conv(depth, w_attn)))
    h1 = jax.nn.relu(conv(a0, w1) + b1[None, :, None, None])
    h2 = jax.nn.relu(conv(h1, w2) + b2[None, :, None, None])
    ac = jax.nn.relu(acoef)
    beta = jnp.stack([jnp.sum(h2[:, i:i + 2] * ac[i:i + 2][None], axis=1)
                      for i in range(0, 6, 2)], axis=1)
    f = jnp.exp(jnp.clip(beta * depth, 0.0, LOG3))
    fm = f * ((depth == 0.0).astype(jnp.float32) / f + (depth > 0.0).astype(jnp.float32))
    jout = fm * direct * wb.reshape(1, 1, 1, 1)
    jout = jnp.where(jnp.isnan(jout), 0.0, jout)
    return fm, jout


if __name__ == "__main__":
    raw = init_params(jax.random.PRNGKey(42))
    packed = pack_params(raw)
    masks = make_masks()

    kd, kx = jax.random.split(jax.random.PRNGKey(0))
    # depth >= 0 with some exact zeros to exercise the (depth == 0) mask.
    depth = jnp.maximum(
        jax.random.uniform(kd, (N_BATCH, 1, H, W), jnp.float32, -0.3, 2.0), 0.0)
    direct = jax.random.uniform(kx, (N_BATCH, 3, H, W), jnp.float32)

    f_masked, J = deattenuate(direct, depth, packed, masks)
    jax.block_until_ready((f_masked, J))

    f_ref, j_ref = reference(direct, depth, raw)
    assert f_masked.shape == (N_BATCH, 3, H, W) and J.shape == (N_BATCH, 3, H, W)
    assert np.allclose(np.asarray(f_masked), np.asarray(f_ref), rtol=5e-2, atol=5e-2)
    assert np.allclose(np.asarray(J), np.asarray(j_ref), rtol=5e-2, atol=5e-2)
    print("KERNEL_OK")
</pallas_src>

<mosaic_0001>
module attributes {stable_mosaic.version = 11 : i64} {
  func.func @deatten_kernel(%arg0: i32, %arg1: memref<1x512xf32, #tpu.memory_space<vmem>>, %arg2: memref<8x512xf32, #tpu.memory_space<vmem>>, %arg3: memref<9x1x512xf32, #tpu.memory_space<vmem>>, %arg4: memref<8x1xf32, #tpu.memory_space<vmem>>, %arg5: memref<16x72xf32, #tpu.memory_space<vmem>>, %arg6: memref<6x144xf32, #tpu.memory_space<vmem>>, %arg7: memref<8x8xf32, #tpu.memory_space<vmem>>, %arg8: memref<8x512xf32, #tpu.memory_space<vmem>>, %arg9: memref<8x512xf32, #tpu.memory_space<vmem>>) attributes {dimension_semantics = [#tpu.dimension_semantics<arbitrary>], iteration_bounds = array<i64: 1>, scalar_prefetch = 0 : i64, scratch_operands = 0 : i64, tpu.core_type = #tpu.core_type<tc>, window_params = [{pipeline_mode = #tpu.pipeline_mode<synchronous>, transform_indices = @transform_0, window_bounds = array<i64: 1, 512>}, {pipeline_mode = #tpu.pipeline_mode<synchronous>, transform_indices = @transform_1, window_bounds = array<i64: 8, 512>}, {pipeline_mode = #tpu.pipeline_mode<synchronous>, transform_indices = @transform_2, window_bounds = array<i64: 9, 1, 512>}, {pipeline_mode = #tpu.pipeline_mode<synchronous>, transform_indices = @transform_3, window_bounds = array<i64: 8, 1>}, {pipeline_mode = #tpu.pipeline_mode<synchronous>, transform_indices = @transform_4, window_bounds = array<i64: 16, 72>}, {pipeline_mode = #tpu.pipeline_mode<synchronous>, transform_indices = @transform_5, window_bounds = array<i64: 6, 144>}, {pipeline_mode = #tpu.pipeline_mode<synchronous>, transform_indices = @transform_6, window_bounds = array<i64: 8, 8>}, {pipeline_mode = #tpu.pipeline_mode<synchronous>, transform_indices = @transform_7, window_bounds = array<i64: 8, 512>}, {pipeline_mode = #tpu.pipeline_mode<synchronous>, transform_indices = @transform_8, window_bounds = array<i64: 8, 512>}]} {
    %c0 = arith.constant 0 : index
    %c0_0 = arith.constant 0 : index
    %0 = vector.load %arg1[%c0, %c0_0] : memref<1x512xf32, #tpu.memory_space<vmem>>, vector<1x512xf32>
    %c0_1 = arith.constant 0 : index
    %c0_2 = arith.constant 0 : index
    %1 = vector.load %arg4[%c0_1, %c0_2] : memref<8x1xf32, #tpu.memory_space<vmem>>, vector<8x1xf32>
    %2 = vector.broadcast %1 : vector<8x1xf32> to vector<8x512xf32>
    %3 = vector.broadcast %0 : vector<1x512xf32> to vector<8x512xf32>
    %4 = arith.mulf %2, %3 : vector<8x512xf32>
    %cst = arith.constant 0.000000e+00 : f32
    %5 = vector.broadcast %cst : f32 to vector<8x512xf32>
    %6 = arith.maximumf %4, %5 : vector<8x512xf32>
    %cst_3 = arith.constant 0.000000e+00 : f32
    %7 = vector.broadcast %cst_3 : f32 to vector<8x512xf32>
    %8 = arith.subf %7, %6 : vector<8x512xf32>
    %9 = math.exp %8 : vector<8x512xf32>
    %c0_4 = arith.constant 0 : index
    %c0_5 = arith.constant 0 : index
    %10 = vector.load %arg5[%c0_4, %c0_5] : memref<16x72xf32, #tpu.memory_space<vmem>>, vector<16x72xf32>
    %11 = vector.extract_strided_slice %9 {offsets = [0, 495], sizes = [8, 17], strides = [1, 1]} : vector<8x512xf32> to vector<8x17xf32>
    %12 = vector.extract_strided_slice %9 {offsets = [0, 0], sizes = [8, 495], strides = [1, 1]} : vector<8x512xf32> to vector<8x495xf32>
    %13 = tpu.concatenate %11, %12 in 1 : vector<8x17xf32>, vector<8x495xf32> -> vector<8x512xf32>
    %c0_6 = arith.constant 0 : index
    %c0_7 = arith.constant 0 : index
    %c0_8 = arith.constant 0 : index
    %14 = vector.load %arg3[%c0_6, %c0_7, %c0_8] : memref<9x1x512xf32, #tpu.memory_space<vmem>>, vector<1x1x512xf32>
    %15 = vector.shape_cast %14 : vector<1x1x512xf32> to vector<1x512xf32>
    %16 = vector.broadcast %15 : vector<1x512xf32> to vector<8x512xf32>
    %17 = arith.mulf %13, %16 : vector<8x512xf32>
    %18 = vector.extract_strided_slice %9 {offsets = [0, 496], sizes = [8, 16], strides = [1, 1]} : vector<8x512xf32> to vector<8x16xf32>
    %19 = vector.extract_strided_slice %9 {offsets = [0, 0], sizes = [8, 496], strides = [1, 1]} : vector<8x512xf32> to vector<8x496xf32>
    %20 = tpu.concatenate %18, %19 in 1 : vector<8x16xf32>, vector<8x496xf32> -> vector<8x512xf32>
    %c1 = arith.constant 1 : index
    %c0_9 = arith.constant 0 : index
    %c0_10 = arith.constant 0 : index
    %21 = vector.load %arg3[%c1, %c0_9, %c0_10] : memref<9x1x512xf32, #tpu.memory_space<vmem>>, vector<1x1x512xf32>
    %22 = vector.shape_cast %21 : vector<1x1x512xf32> to vector<1x512xf32>
    %23 = vector.broadcast %22 : vector<1x512xf32> to vector<8x512xf32>
    %24 = arith.mulf %20, %23 : vector<8x512xf32>
    %25 = vector.extract_strided_slice %9 {offsets = [0, 497], sizes = [8, 15], strides = [1, 1]} : vector<8x512xf32> to vector<8x15xf32>
    %26 = vector.extract_strided_slice %9 {offsets = [0, 0], sizes = [8, 497], strides = [1, 1]} : vector<8x512xf32> to vector<8x497xf32>
    %27 = tpu.concatenate %25, %26 in 1 : vector<8x15xf32>, vector<8x497xf32> -> vector<8x512xf32>
    %c2 = arith.constant 2 : index
    %c0_11 = arith.constant 0 : index
    %c0_12 = arith.constant 0 : index
    %28 = vector.load %arg3[%c2, %c0_11, %c0_12] : memref<9x1x512xf32, #tpu.memory_space<vmem>>, vector<1x1x512xf32>
    %29 = vector.shape_cast %28 : vector<1x1x512xf32> to vector<1x512xf32>
    %30 = vector.broadcast %29 : vector<1x512xf32> to vector<8x512xf32>
    %31 = arith.mulf %27, %30 : vector<8x512xf32>
    %32 = vector.extract_strided_slice %9 {offsets = [0, 511], sizes = [8, 1], strides = [1, 1]} : vector<8x512xf32> to vector<8x1xf32>
    %33 = vector.extract_strided_slice %9 {offsets = [0, 0], sizes = [8, 511], strides = [1, 1]} : vector<8x512xf32> to vector<8x511xf32>
    %34 = tpu.concatenate %32, %33 in 1 : vector<8x1xf32>, vector<8x511xf32> -> vector<8x512xf32>
    %c3 = arith.constant 3 : index
    %c0_13 = arith.constant 0 : index
    %c0_14 = arith.constant 0 : index
    %35 = vector.load %arg3[%c3, %c0_13, %c0_14] : memref<9x1x512xf32, #tpu.memory_space<vmem>>, vector<1x1x512xf32>
    %36 = vector.shape_cast %35 : vector<1x1x512xf32> to vector<1x512xf32>
    %37 = vector.broadcast %36 : vector<1x512xf32> to vector<8x512xf32>
    %38 = arith.mulf %34, %37 : vector<8x512xf32>
    %39 = vector.extract_strided_slice %9 {offsets = [0, 1], sizes = [8, 511], strides = [1, 1]} : vector<8x512xf32> to vector<8x511xf32>
    %40 = vector.extract_strided_slice %9 {offsets = [0, 0], sizes = [8, 1], strides = [1, 1]} : vector<8x512xf32> to vector<8x1xf32>
    %41 = tpu.concatenate %39, %40 in 1 : vector<8x511xf32>, vector<8x1xf32> -> vector<8x512xf32>
    %c5 = arith.constant 5 : index
    %c0_15 = arith.constant 0 : index
    %c0_16 = arith.constant 0 : index
    %42 = vector.load %arg3[%c5, %c0_15, %c0_16] : memref<9x1x512xf32, #tpu.memory_space<vmem>>, vector<1x1x512xf32>
    %43 = vector.shape_cast %42 : vector<1x1x512xf32> to vector<1x512xf32>
    %44 = vector.broadcast %43 : vector<1x512xf32> to vector<8x512xf32>
    %45 = arith.mulf %41, %44 : vector<8x512xf32>
    %46 = vector.extract_strided_slice %9 {offsets = [0, 15], sizes = [8, 497], strides = [1, 1]} : vector<8x512xf32> to vector<8x497xf32>
    %47 = vector.extract_strided_slice %9 {offsets = [0, 0], sizes = [8, 15], strides = [1, 1]} : vector<8x512xf32> to vector<8x15xf32>
    %48 = tpu.concatenate %46, %47 in 1 : vector<8x497xf32>, vector<8x15xf32> -> vector<8x512xf32>
    %c6 = arith.constant 6 : index
    %c0_17 = arith.constant 0 : index
    %c0_18 = arith.constant 0 : index
    %49 = vector.load %arg3[%c6, %c0_17, %c0_18] : memref<9x1x512xf32, #tpu.memory_space<vmem>>, vector<1x1x512xf32>
    %50 = vector.shape_cast %49 : vector<1x1x512xf32> to vector<1x512xf32>
    %51 = vector.broadcast %50 : vector<1x512xf32> to vector<8x512xf32>
    %52 = arith.mulf %48, %51 : vector<8x512xf32>
    %53 = vector.extract_strided_slice %9 {offsets = [0, 16], sizes = [8, 496], strides = [1, 1]} : vector<8x512xf32> to vector<8x496xf32>
    %54 = vector.extract_strided_slice %9 {offsets = [0, 0], sizes = [8, 16], strides = [1, 1]} : vector<8x512xf32> to vector<8x16xf32>
    %55 = tpu.concatenate %53, %54 in 1 : vector<8x496xf32>, vector<8x16xf32> -> vector<8x512xf32>
    %c7 = arith.constant 7 : index
    %c0_19 = arith.constant 0 : index
    %c0_20 = arith.constant 0 : index
    %56 = vector.load %arg3[%c7, %c0_19, %c0_20] : memref<9x1x512xf32, #tpu.memory_space<vmem>>, vector<1x1x512xf32>
    %57 = vector.shape_cast %56 : vector<1x1x512xf32> to vector<1x512xf32>
    %58 = vector.broadcast %57 : vector<1x512xf32> to vector<8x512xf32>
    %59 = arith.mulf %55, %58 : vector<8x512xf32>
    %60 = vector.extract_strided_slice %9 {offsets = [0, 17], sizes = [8, 495], strides = [1, 1]} : vector<8x512xf32> to vector<8x495xf32>
    %61 = vector.extract_strided_slice %9 {offsets = [0, 0], sizes = [8, 17], strides = [1, 1]} : vector<8x512xf32> to vector<8x17xf32>
    %62 = tpu.concatenate %60, %61 in 1 : vector<8x495xf32>, vector<8x17xf32> -> vector<8x512xf32>
    %c8 = arith.constant 8 : index
    %c0_21 = arith.constant 0 : index
    %c0_22 = arith.constant 0 : index
    %63 = vector.load %arg3[%c8, %c0_21, %c0_22] : memref<9x1x512xf32, #tpu.memory_space<vmem>>, vector<1x1x512xf32>
    %64 = vector.shape_cast %63 : vector<1x1x512xf32> to vector<1x512xf32>
    %65 = vector.broadcast %64 : vector<1x512xf32> to vector<8x512xf32>
    %66 = arith.mulf %62, %65 : vector<8x512xf32>
    %67 = tpu.concatenate %17, %24, %31, %38, %9, %45, %52, %59, %66 in 0 : vector<8x512xf32>, vector<8x512xf32>, vector<8x512xf32>, vector<8x512xf32>, vector<8x512xf32>, vector<8x512xf32>, vector<8x512xf32>, vector<8x512xf32>, vector<8x512xf32> -> vector<72x512xf32>
    %cst_23 = arith.constant dense<0.000000e+00> : vector<16x512xf32>
    %68 = tpu.matmul %10, %67, %cst_23 {dimension_numbers = #tpu.dot_dimension_numbers<[1], [0], [0], [1], [0, 0, 1, 1], [], []>} : vector<16x72xf32>, vector<72x512xf32>, vector<16x512xf32> -> vector<16x512xf32>
    %cst_24 = arith.constant 0.000000e+00 : f32
    %69 = vector.broadcast %cst_24 : f32 to vector<16x512xf32>
    %70 = arith.maximumf %68, %69 : vector<16x512xf32>
    %c0_25 = arith.constant 0 : index
    %c0_26 = arith.constant 0 : index
    %71 = vector.load %arg6[%c0_25, %c0_26] : memref<6x144xf32, #tpu.memory_space<vmem>>, vector<6x144xf32>
    %72 = vector.extract_strided_slice %70 {offsets = [0, 495], sizes = [16, 17], strides = [1, 1]} : vector<16x512xf32> to vector<16x17xf32>
    %73 = vector.extract_strided_slice %70 {offsets = [0, 0], sizes = [16, 495], strides = [1, 1]} : vector<16x512xf32> to vector<16x495xf32>
    %74 = tpu.concatenate %72, %73 in 1 : vector<16x17xf32>, vector<16x495xf32> -> vector<16x512xf32>
    %c0_27 = arith.constant 0 : index
    %c0_28 = arith.constant 0 : index
    %c0_29 = arith.constant 0 : index
    %75 = vector.load %arg3[%c0_27, %c0_28, %c0_29] : memref<9x1x512xf32, #tpu.memory_space<vmem>>, vector<1x1x512xf32>
    %76 = vector.shape_cast %75 : vector<1x1x512xf32> to vector<1x512xf32>
    %77 = vector.broadcast %76 : vector<1x512xf32> to vector<16x512xf32>
    %78 = arith.mulf %74, %77 : vector<16x512xf32>
    %79 = vector.extract_strided_slice %70 {offsets = [0, 496], sizes = [16, 16], strides = [1, 1]} : vector<16x512xf32> to vector<16x16xf32>
    %80 = vector.extract_strided_slice %70 {offsets = [0, 0], sizes = [16, 496], strides = [1, 1]} : vector<16x512xf32> to vector<16x496xf32>
    %81 = tpu.concatenate %79, %80 in 1 : vector<16x16xf32>, vector<16x496xf32> -> vector<16x512xf32>
    %c1_30 = arith.constant 1 : index
    %c0_31 = arith.constant 0 : index
    %c0_32 = arith.constant 0 : index
    %82 = vector.load %arg3[%c1_30, %c0_31, %c0_32] : memref<9x1x512xf32, #tpu.memory_space<vmem>>, vector<1x1x512xf32>
    %83 = vector.shape_cast %82 : vector<1x1x512xf32> to vector<1x512xf32>
    %84 = vector.broadcast %83 : vector<1x512xf32> to vector<16x512xf32>
    %85 = arith.mulf %81, %84 : vector<16x512xf32>
    %86 = vector.extract_strided_slice %70 {offsets = [0, 497], sizes = [16, 15], strides = [1, 1]} : vector<16x512xf32> to vector<16x15xf32>
    %87 = vector.extract_strided_slice %70 {offsets = [0, 0], sizes = [16, 497], strides = [1, 1]} : vector<16x512xf32> to vector<16x497xf32>
    %88 = tpu.concatenate %86, %87 in 1 : vector<16x15xf32>, vector<16x497xf32> -> vector<16x512xf32>
    %c2_33 = arith.constant 2 : index
    %c0_34 = arith.constant 0 : index
    %c0_35 = arith.constant 0 : index
    %89 = vector.load %arg3[%c2_33, %c0_34, %c0_35] : memref<9x1x512xf32, #tpu.memory_space<vmem>>, vector<1x1x512xf32>
    %90 = vector.shape_cast %89 : vector<1x1x512xf32> to vector<1x512xf32>
    %91 = vector.broadcast %90 : vector<1x512xf32> to vector<16x512xf32>
    %92 = arith.mulf %88, %91 : vector<16x512xf32>
    %93 = vector.extract_strided_slice %70 {offsets = [0, 511], sizes = [16, 1], strides = [1, 1]} : vector<16x512xf32> to vector<16x1xf32>
    %94 = vector.extract_strided_slice %70 {offsets = [0, 0], sizes = [16, 511], strides = [1, 1]} : vector<16x512xf32> to vector<16x511xf32>
    %95 = tpu.concatenate %93, %94 in 1 : vector<16x1xf32>, vector<16x511xf32> -> vector<16x512xf32>
    %c3_36 = arith.constant 3 : index
    %c0_37 = arith.constant 0 : index
    %c0_38 = arith.constant 0 : index
    %96 = vector.load %arg3[%c3_36, %c0_37, %c0_38] : memref<9x1x512xf32, #tpu.memory_space<vmem>>, vector<1x1x512xf32>
    %97 = vector.shape_cast %96 : vector<1x1x512xf32> to vector<1x512xf32>
    %98 = vector.broadcast %97 : vector<1x512xf32> to vector<16x512xf32>
    %99 = arith.mulf %95, %98 : vector<16x512xf32>
    %100 = vector.extract_strided_slice %70 {offsets = [0, 1], sizes = [16, 511], strides = [1, 1]} : vector<16x512xf32> to vector<16x511xf32>
    %101 = vector.extract_strided_slice %70 {offsets = [0, 0], sizes = [16, 1], strides = [1, 1]} : vector<16x512xf32> to vector<16x1xf32>
    %102 = tpu.concatenate %100, %101 in 1 : vector<16x511xf32>, vector<16x1xf32> -> vector<16x512xf32>
    %c5_39 = arith.constant 5 : index
    %c0_40 = arith.constant 0 : index
    %c0_41 = arith.constant 0 : index
    %103 = vector.load %arg3[%c5_39, %c0_40, %c0_41] : memref<9x1x512xf32, #tpu.memory_space<vmem>>, vector<1x1x512xf32>
    %104 = vector.shape_cast %103 : vector<1x1x512xf32> to vector<1x512xf32>
    %105 = vector.broadcast %104 : vector<1x512xf32> to vector<16x512xf32>
    %106 = arith.mulf %102, %105 : vector<16x512xf32>
    %107 = vector.extract_strided_slice %70 {offsets = [0, 15], sizes = [16, 497], strides = [1, 1]} : vector<16x512xf32> to vector<16x497xf32>
    %108 = vector.extract_strided_slice %70 {offsets = [0, 0], sizes = [16, 15], strides = [1, 1]} : vector<16x512xf32> to vector<16x15xf32>
    %109 = tpu.concatenate %107, %108 in 1 : vector<16x497xf32>, vector<16x15xf32> -> vector<16x512xf32>
    %c6_42 = arith.constant 6 : index
    %c0_43 = arith.constant 0 : index
    %c0_44 = arith.constant 0 : index
    %110 = vector.load %arg3[%c6_42, %c0_43, %c0_44] : memref<9x1x512xf32, #tpu.memory_space<vmem>>, vector<1x1x512xf32>
    %111 = vector.shape_cast %110 : vector<1x1x512xf32> to vector<1x512xf32>
    %112 = vector.broadcast %111 : vector<1x512xf32> to vector<16x512xf32>
    %113 = arith.mulf %109, %112 : vector<16x512xf32>
    %114 = vector.extract_strided_slice %70 {offsets = [0, 16], sizes = [16, 496], strides = [1, 1]} : vector<16x512xf32> to vector<16x496xf32>
    %115 = vector.extract_strided_slice %70 {offsets = [0, 0], sizes = [16, 16], strides = [1, 1]} : vector<16x512xf32> to vector<16x16xf32>
    %116 = tpu.concatenate %114, %115 in 1 : vector<16x496xf32>, vector<16x16xf32> -> vector<16x512xf32>
    %c7_45 = arith.constant 7 : index
    %c0_46 = arith.constant 0 : index
    %c0_47 = arith.constant 0 : index
    %117 = vector.load %arg3[%c7_45, %c0_46, %c0_47] : memref<9x1x512xf32, #tpu.memory_space<vmem>>, vector<1x1x512xf32>
    %118 = vector.shape_cast %117 : vector<1x1x512xf32> to vector<1x512xf32>
    %119 = vector.broadcast %118 : vector<1x512xf32> to vector<16x512xf32>
    %120 = arith.mulf %116, %119 : vector<16x512xf32>
    %121 = vector.extract_strided_slice %70 {offsets = [0, 17], sizes = [16, 495], strides = [1, 1]} : vector<16x512xf32> to vector<16x495xf32>
    %122 = vector.extract_strided_slice %70 {offsets = [0, 0], sizes = [16, 17], strides = [1, 1]} : vector<16x512xf32> to vector<16x17xf32>
    %123 = tpu.concatenate %121, %122 in 1 : vector<16x495xf32>, vector<16x17xf32> -> vector<16x512xf32>
    %c8_48 = arith.constant 8 : index
    %c0_49 = arith.constant 0 : index
    %c0_50 = arith.constant 0 : index
    %124 = vector.load %arg3[%c8_48, %c0_49, %c0_50] : memref<9x1x512xf32, #tpu.memory_space<vmem>>, vector<1x1x512xf32>
    %125 = vector.shape_cast %124 : vector<1x1x512xf32> to vector<1x512xf32>
    %126 = vector.broadcast %125 : vector<1x512xf32> to vector<16x512xf32>
    %127 = arith.mulf %123, %126 : vector<16x512xf32>
    %128 = tpu.concatenate %78, %85, %92, %99, %70, %106, %113, %120, %127 in 0 : vector<16x512xf32>, vector<16x512xf32>, vector<16x512xf32>, vector<16x512xf32>, vector<16x512xf32>, vector<16x512xf32>, vector<16x512xf32>, vector<16x512xf32>, vector<16x512xf32> -> vector<144x512xf32>
    %cst_51 = arith.constant dense<0.000000e+00> : vector<6x512xf32>
    %129 = tpu.matmul %71, %128, %cst_51 {dimension_numbers = #tpu.dot_dimension_numbers<[1], [0], [0], [1], [0, 0, 1, 1], [], []>} : vector<6x144xf32>, vector<144x512xf32>, vector<6x512xf32> -> vector<6x512xf32>
    %cst_52 = arith.constant 0.000000e+00 : f32
    %130 = vector.broadcast %cst_52 : f32 to vector<6x512xf32>
    %131 = arith.maximumf %129, %130 : vector<6x512xf32>
    %c0_53 = arith.constant 0 : index
    %c0_54 = arith.constant 0 : index
    %132 = vector.load %arg7[%c0_53, %c0_54] : memref<8x8xf32, #tpu.memory_space<vmem>>, vector<8x8xf32>
    %133 = vector.extract_strided_slice %132 {offsets = [0, 0], sizes = [8, 6], strides = [1, 1]} : vector<8x8xf32> to vector<8x6xf32>
    %cst_55 = arith.constant dense<0.000000e+00> : vector<8x512xf32>
    %134 = tpu.matmul %133, %131, %cst_55 {dimension_numbers = #tpu.dot_dimension_numbers<[1], [0], [0], [1], [0, 0, 1, 1], [], []>} : vector<8x6xf32>, vector<6x512xf32>, vector<8x512xf32> -> vector<8x512xf32>
    %135 = vector.broadcast %0 : vector<1x512xf32> to vector<8x512xf32>
    %136 = arith.mulf %134, %135 : vector<8x512xf32>
    %cst_56 = arith.constant 0.000000e+00 : f32
    %cst_57 = arith.constant 1.09861231 : f32
    %137 = vector.broadcast %cst_56 : f32 to vector<8x512xf32>
    %138 = arith.maximumf %137, %136 : vector<8x512xf32>
    %139 = vector.broadcast %cst_57 : f32 to vector<8x512xf32>
    %140 = arith.minimumf %139, %138 : vector<8x512xf32>
    %141 = math.exp %140 : vector<8x512xf32>
    %cst_58 = arith.constant 0.000000e+00 : f32
    %142 = vector.broadcast %cst_58 : f32 to vector<1x512xf32>
    %143 = arith.cmpf ogt, %0, %142 : vector<1x512xf32>
    %cst_59 = arith.constant 0.000000e+00 : f32
    %144 = vector.broadcast %cst_59 : f32 to vector<1x512xf32>
    %145 = arith.cmpf oeq, %0, %144 : vector<1x512xf32>
    %146 = arith.extui %145 : vector<1x512xi1> to vector<1x512xi32>
    %147 = arith.sitofp %146 : vector<1x512xi32> to vector<1x512xf32>
    %148 = vector.shape_cast %143 : vector<1x512xi1> to vector<1x512xi1>
    %149 = vector.broadcast %148 : vector<1x512xi1> to vector<8x512xi1>
    %150 = vector.shape_cast %147 : vector<1x512xf32> to vector<1x512xf32>
    %151 = vector.broadcast %150 : vector<1x512xf32> to vector<8x512xf32>
    %152 = arith.select %149, %141, %151 : vector<8x512xi1>, vector<8x512xf32>
    %c0_60 = arith.constant 0 : index
    %c0_61 = arith.constant 0 : index
    %153 = vector.load %arg2[%c0_60, %c0_61] : memref<8x512xf32, #tpu.memory_space<vmem>>, vector<8x512xf32>
    %154 = arith.mulf %152, %153 : vector<8x512xf32>
    %155 = vector.extract_strided_slice %132 {offsets = [0, 6], sizes = [8, 1], strides = [1, 1]} : vector<8x8xf32> to vector<8x1xf32>
    %156 = vector.broadcast %155 : vector<8x1xf32> to vector<8x512xf32>
    %157 = arith.mulf %154, %156 : vector<8x512xf32>
    %158 = arith.cmpf one, %157, %157 : vector<8x512xf32>
    %cst_62 = arith.constant 0.000000e+00 : f32
    %159 = vector.broadcast %cst_62 : f32 to vector<8x512xf32>
    %160 = arith.select %158, %159, %157 : vector<8x512xi1>, vector<8x512xf32>
    %c0_63 = arith.constant 0 : index
    %c0_64 = arith.constant 0 : index
    %161 = vector.load %arg8[%c0_63, %c0_64] : memref<8x512xf32, #tpu.memory_space<vmem>>, vector<8x512xf32>
    tpu.vector_store %arg8[%c0_63, %c0_64], %152 {strides = array<i32>} : memref<8x512xf32, #tpu.memory_space<vmem>>, vector<8x512xf32>,
    %c0_65 = arith.constant 0 : index
    %c0_66 = arith.constant 0 : index
    %162 = vector.load %arg9[%c0_65, %c0_66] : memref<8x512xf32, #tpu.memory_space<vmem>>, vector<8x512xf32>
    tpu.vector_store %arg9[%c0_65, %c0_66], %160 {strides = array<i32>} : memref<8x512xf32, #tpu.memory_space<vmem>>, vector<8x512xf32>,
    return
  }
  func.func @transform_0(%arg0: i32) -> (i32, i32) {
    %c0_i32 = arith.constant 0 : i32
    %c0_i32_0 = arith.constant 0 : i32
    %c0_i32_1 = arith.constant 0 : i32
    return %c0_i32, %c0_i32_0 : i32, i32
  }
  func.func @transform_1(%arg0: i32) -> (i32, i32) {
    %c0_i32 = arith.constant 0 : i32
    %c0_i32_0 = arith.constant 0 : i32
    %c0_i32_1 = arith.constant 0 : i32
    return %c0_i32, %c0_i32_0 : i32, i32
  }
  func.func @transform_2(%arg0: i32) -> (i32, i32, i32) {
    %c0_i32 = arith.constant 0 : i32
    %c0_i32_0 = arith.constant 0 : i32
    %c0_i32_1 = arith.constant 0 : i32
    %c0_i32_2 = arith.constant 0 : i32
    return %c0_i32, %c0_i32_0, %c0_i32_1 : i32, i32, i32
  }
  func.func @transform_3(%arg0: i32) -> (i32, i32) {
    %c0_i32 = arith.constant 0 : i32
    %c0_i32_0 = arith.constant 0 : i32
    %c0_i32_1 = arith.constant 0 : i32
    return %c0_i32, %c0_i32_0 : i32, i32
  }
  func.func @transform_4(%arg0: i32) -> (i32, i32) {
    %c0_i32 = arith.constant 0 : i32
    %c0_i32_0 = arith.constant 0 : i32
    %c0_i32_1 = arith.constant 0 : i32
    return %c0_i32, %c0_i32_0 : i32, i32
  }
  func.func @transform_5(%arg0: i32) -> (i32, i32) {
    %c0_i32 = arith.constant 0 : i32
    %c0_i32_0 = arith.constant 0 : i32
    %c0_i32_1 = arith.constant 0 : i32
    return %c0_i32, %c0_i32_0 : i32, i32
  }
  func.func @transform_6(%arg0: i32) -> (i32, i32) {
    %c0_i32 = arith.constant 0 : i32
    %c0_i32_0 = arith.constant 0 : i32
    %c0_i32_1 = arith.constant 0 : i32
    return %c0_i32, %c0_i32_0 : i32, i32
  }
  func.func @transform_7(%arg0: i32) -> (i32, i32) {
    %c0_i32 = arith.constant 0 : i32
    %c0_i32_0 = arith.constant 0 : i32
    %c0_i32_1 = arith.constant 0 : i32
    return %c0_i32, %c0_i32_0 : i32, i32
  }
  func.func @transform_8(%arg0: i32) -> (i32, i32) {
    %c0_i32 = arith.constant 0 : i32
    %c0_i32_0 = arith.constant 0 : i32
    %c0_i32_1 = arith.constant 0 : i32
    return %c0_i32, %c0_i32_0 : i32, i32
  }
}

</mosaic_0001>

<llo_original>
// kernel: tpu_custom_call.1
$region0: #{tpu_custom_call.1}
  #allocation0 [shape = 'u32[]', space=smem, size = 0x4, offset = 0x4, fixed_abs, tag = 'smem constant byte address 0x4 - core index']
  #allocation1 [shape = 'u32[144,128]{1,0:T(1,128)}', space=vmem, size = 0x12000, scoped, tag = 'internal scratch']
  %s0 = inlined_call_operand.hbm [shape: f32[1,512], index: 0, kind: input, shape index: {}]
  %s1 = inlined_call_operand.hbm [shape: f32[8,512], index: 1, kind: input, shape index: {}]
  %s2 = inlined_call_operand.hbm [shape: f32[9,1,512], index: 2, kind: input, shape index: {}]
  %s3 = inlined_call_operand.vmem [shape: f32[8,1], index: 3, kind: input, shape index: {}]
  %s4 = inlined_call_operand.vmem [shape: f32[16,72], index: 4, kind: input, shape index: {}]
  %s5 = inlined_call_operand.hbm [shape: f32[6,144], index: 5, kind: input, shape index: {}]
  %s6 = inlined_call_operand.vmem [shape: f32[8,8], index: 6, kind: input, shape index: {}]
  %s7 = inlined_call_operand.hbm [shape: f32[8,512], index: 7, kind: output, shape index: {0}]
  %s8 = inlined_call_operand.hbm [shape: f32[8,512], index: 8, kind: output, shape index: {1}]
  %9 = xla_tuple %s7, %s8
  %s10 = sld [smem:[#allocation0]]
  $region62: #{tpu_custom_call.1} parent=0
    _
  %s12 = ssub.s32 1, %s10
  %s13 = scalar_select 0, %s12, %s10
  $region1: #{tpu_custom_call.1} parent=0
    #allocation2 [shape = 'u8[2048]{0}', space=vmem, size = 0x800, scoped, tag = 'input window, operand 0, single buffered']
    #allocation3 [shape = 's32[1]{0}', space=sflag, size = 0x4, scoped, tag = 'scoped memory for tpu_custom_call.1']
    #allocation4 [shape = 's32[1]{0}', space=sflag, size = 0x4, scoped, tag = 'scoped memory for tpu_custom_call.1']
    #allocation5 [shape = 'u8[16384]{0}', space=vmem, size = 0x4000, scoped, tag = 'input window, operand 1, single buffered']
    #allocation6 [shape = 's32[1]{0}', space=sflag, size = 0x4, scoped, tag = 'scoped memory for tpu_custom_call.1']
    #allocation7 [shape = 'u8[18432]{0}', space=vmem, size = 0x4800, scoped, tag = 'input window, operand 2, single buffered']
    #allocation8 [shape = 'u8[8192]{0}', space=vmem, size = 0x2000, scoped, tag = 'input window, operand 5, single buffered']
    #allocation9 [shape = 's32[1]{0}', space=sflag, size = 0x4, scoped, tag = 'scoped memory for tpu_custom_call.1']
    #allocation10 [shape = 'u8[16384]{0}', space=vmem, size = 0x4000, scoped, tag = 'output window, operand 0, single buffered']
    #allocation11 [shape = 'u8[16384]{0}', space=vmem, size = 0x4000, scoped, tag = 'output window, operand 1, single buffered']
    #allocation12 [shape = 's32[1]{0}', space=sflag, size = 0x4, scoped, tag = 'scoped memory for tpu_custom_call.1']
    %14 = vsyncpa [#allocation3], 0
    %15 = vsyncpa [#allocation6], 0
    %16 = vsyncpa [#allocation9], 0
    %17 = vsyncpa [#allocation4], 0
    %18 = vsyncpa [#allocation12], 0
    // Predicated region
    $region2: #{tpu_custom_call.1} parent=1 // pred_check
      _
    $region3: #{tpu_custom_call.1} parent=1 // pred_check_branch
      %20 = sbr.rel (0) target = $region5
    $region4: #{tpu_custom_call.1} parent=1 // pred_region
      %s22 = ssub.s32 64, 64
      %23 = vsyncadd [#allocation3], %s22
      %s25 = sshll.u32 [#allocation2], 4
      %s26 = int_to_ptr.vmem [resolvable:$true] %s25
      %28 = dma.hbm_to_vmem [thread:$0]  %s0, 64, %s26, [#allocation3]
    $region5: #{tpu_custom_call.1} parent=1 // pred_fallthru
      _
    // Predicated region
    $region6: #{tpu_custom_call.1} parent=1 // pred_check
      _
    $region7: #{tpu_custom_call.1} parent=1 // pred_check_branch
      %30 = sbr.rel (0) target = $region9
    $region8: #{tpu_custom_call.1} parent=1 // pred_region
      %s32 = ssub.s32 512, 512
      %33 = vsyncadd [#allocation6], %s32
      %s35 = sshll.u32 [#allocation5], 4
      %s36 = int_to_ptr.vmem [resolvable:$true] %s35
      %38 = dma.hbm_to_vmem [thread:$0]  %s1, 512, %s36, [#allocation6]
    $region9: #{tpu_custom_call.1} parent=1 // pred_fallthru
      _
    // Predicated region
    $region10: #{tpu_custom_call.1} parent=1 // pred_check
      _
    $region11: #{tpu_custom_call.1} parent=1 // pred_check_branch
      %40 = sbr.rel (0) target = $region13
    $region12: #{tpu_custom_call.1} parent=1 // pred_region
      %s42 = ssub.s32 576, 576
      %43 = vsyncadd [#allocation6], %s42
      %s44 = sshll.u32 [#allocation7], 4
      %s45 = int_to_ptr.vmem [resolvable:$true] %s44
      %50 = dma.hbm_to_vmem [thread:$0]  %s2, 576, %s45, [#allocation6], 64, 64, 4
    $region13: #{tpu_custom_call.1} parent=1 // pred_fallthru
      _
    // Predicated region
    $region14: #{tpu_custom_call.1} parent=1 // pred_check
      _
    $region15: #{tpu_custom_call.1} parent=1 // pred_check_branch
      %52 = sbr.rel (0) target = $region17
    $region16: #{tpu_custom_call.1} parent=1 // pred_region
      _
    $region17: #{tpu_custom_call.1} parent=1 // pred_fallthru
      _
    // Predicated region
    $region18: #{tpu_custom_call.1} parent=1 // pred_check
      _
    $region19: #{tpu_custom_call.1} parent=1 // pred_check_branch
      %54 = sbr.rel (0) target = $region21
    $region20: #{tpu_custom_call.1} parent=1 // pred_region
      _
    $region21: #{tpu_custom_call.1} parent=1 // pred_fallthru
      _
    // Predicated region
    $region22: #{tpu_custom_call.1} parent=1 // pred_check
      _
    $region23: #{tpu_custom_call.1} parent=1 // pred_check_branch
      %56 = sbr.rel (0) target = $region25
    $region24: #{tpu_custom_call.1} parent=1 // pred_region
      %s58 = ssub.s32 256, 256
      %59 = vsyncadd [#allocation9], %s58
      %s61 = sshll.u32 [#allocation8], 4
      %s62 = int_to_ptr.vmem [resolvable:$true] %s61
      %64 = dma.hbm_to_vmem [thread:$0]  %s5, 256, %s62, [#allocation9]
    $region25: #{tpu_custom_call.1} parent=1 // pred_fallthru
      _
    // Predicated region
    $region26: #{tpu_custom_call.1} parent=1 // pred_check
      _
    $region27: #{tpu_custom_call.1} parent=1 // pred_check_branch
      %66 = sbr.rel (0) target = $region29
    $region28: #{tpu_custom_call.1} parent=1 // pred_region
      _
    $region29: #{tpu_custom_call.1} parent=1 // pred_fallthru
      _
    // Predicated region
    $region30: #{tpu_custom_call.1} parent=1 // pred_check
      _
    $region31: #{tpu_custom_call.1} parent=1 // pred_check_branch
      %68 = sbr.rel (0) target = $region33
    $region32: #{tpu_custom_call.1} parent=1 // pred_region
      %69 = dma.done [#allocation3], 64
    $region33: #{tpu_custom_call.1} parent=1 // pred_fallthru
      _
    // Predicated region
    $region34: #{tpu_custom_call.1} parent=1 // pred_check
      _
    $region35: #{tpu_custom_call.1} parent=1 // pred_check_branch
      %71 = sbr.rel (0) target = $region37
    $region36: #{tpu_custom_call.1} parent=1 // pred_region
      %72 = dma.done [#allocation6], 512
    $region37: #{tpu_custom_call.1} parent=1 // pred_fallthru
      _
    // Predicated region
    $region38: #{tpu_custom_call.1} parent=1 // pred_check
      _
    $region39: #{tpu_custom_call.1} parent=1 // pred_check_branch
      %74 = sbr.rel (0) target = $region41
    $region40: #{tpu_custom_call.1} parent=1 // pred_region
      %75 = dma.done [#allocation6], 576
    $region41: #{tpu_custom_call.1} parent=1 // pred_fallthru
      _
    // Predicated region
    $region42: #{tpu_custom_call.1} parent=1 // pred_check
      _
    $region43: #{tpu_custom_call.1} parent=1 // pred_check_branch
      %77 = sbr.rel (0) target = $region45
    $region44: #{tpu_custom_call.1} parent=1 // pred_region
      %78 = dma.done [#allocation9], 256
    $region45: #{tpu_custom_call.1} parent=1 // pred_fallthru
      _
    %v79 = vld [vmem:[#allocation2] sm:$0xf]
    %v80 = vld [vmem:[%s3] sm:$0xff]
    %82 = vset.pattern.permute.xlu0 0
    %83 = vperm.xlu0 %82, %v80
    %v84 = vpop.permute.xlu0 %83
    %v87 = vlaneseq
    %v88 = vshrl.u32 %v87, 7
    %v89 = vsub.s32 0, %v88
    %v90 = vrot.slane %v79, %v89
    %v91 = vlaneseq
    %v92 = vshrl.u32 %v91, 7
    %v93 = vsub.s32 1, %v92
    %v94 = vrot.slane %v79, %v93
    %v95 = vlaneseq
    %v96 = vshrl.u32 %v95, 7
    %v97 = vsub.s32 2, %v96
    %v98 = vrot.slane %v79, %v97
    %v99 = vlaneseq
    %v100 = vshrl.u32 %v99, 7
    %v101 = vsub.s32 3, %v100
    %v102 = vrot.slane %v79, %v101
    %v107 = vmul.f32 %v84, %v90
    %v108 = vmul.f32 %v84, %v94
    %v109 = vmul.f32 %v84, %v98
    %v110 = vmul.f32 %v84, %v102
    %v111 = vmax.f32 %v107, 0.0
    %v112 = vmax.f32 %v108, 0.0
    %v113 = vmax.f32 %v109, 0.0
    %v114 = vmax.f32 %v110, 0.0
    %v115 = vsub.f32 0.0, %v111
    %v116 = vsub.f32 0.0, %v112
    %v117 = vsub.f32 0.0, %v113
    %v118 = vsub.f32 0.0, %v114
    %v119 = vmul.f32 %v115, 1.442695
    %v120 = vpow.pop %v119
    %v121 = vmul.f32 %v116, 1.442695
    %v122 = vpow.pop %v121
    %v123 = vmul.f32 %v117, 1.442695
    %v124 = vpow.pop %v123
    %v125 = vmul.f32 %v118, 1.442695
    %v126 = vpow.pop %v125
    %v127 = vld [vmem:[%s4] sm:$0xff]
    %v128 = vld [vmem:[%s4 + $0x8] sm:$0xff]
    %130 = vrot.lane.b32.xlu0 %v126, 17
    %v131 = vpop.permute.xlu0 %130
    %136 = vrot.lane.b32.xlu0 %v120, 17
    %v137 = vpop.permute.xlu0 %136
    %138 = vrot.lane.b32.xlu0 %v122, 17
    %v139 = vpop.permute.xlu0 %138
    %140 = vrot.lane.b32.xlu0 %v124, 17
    %v141 = vpop.permute.xlu0 %140
    %vm142 = vcmask 138240
    %v143 = vsel %vm142, %v137, %v139
    %v144 = vsel %vm142, %v139, %v141
    %v145 = vsel %vm142, %v141, %v131
    %v150 = vsel %vm142, %v131, %v137
    %v151 = vld [vmem:[#allocation7] sm:$0xf]
    %v153 = vlaneseq
    %v154 = vshrl.u32 %v153, 7
    %v155 = vsub.s32 0, %v154
    %v156 = vrot.slane %v151, %v155
    %v157 = vlaneseq
    %v158 = vshrl.u32 %v157, 7
    %v159 = vsub.s32 1, %v158
    %v160 = vrot.slane %v151, %v159
    %v161 = vlaneseq
    %v162 = vshrl.u32 %v161, 7
    %v163 = vsub.s32 2, %v162
    %v164 = vrot.slane %v151, %v163
    %v165 = vlaneseq
    %v166 = vshrl.u32 %v165, 7
    %v167 = vsub.s32 3, %v166
    %v168 = vrot.slane %v151, %v167
    %v173 = vmul.f32 %v150, %v156
    %v174 = vmul.f32 %v143, %v160
    %v175 = vmul.f32 %v144, %v164
    %v176 = vmul.f32 %v145, %v168
    %177 = vrot.lane.b32.xlu0 %v126, 16
    %v178 = vpop.permute.xlu0 %177
    %180 = vrot.lane.b32.xlu0 %v120, 16
    %v181 = vpop.permute.xlu0 %180
    %182 = vrot.lane.b32.xlu0 %v122, 16
    %v183 = vpop.permute.xlu0 %182
    %184 = vrot.lane.b32.xlu0 %v124, 16
    %v185 = vpop.permute.xlu0 %184
    %vm186 = vcmask 130048
    %v187 = vsel %vm186, %v181, %v183
    %v188 = vsel %vm186, %v183, %v185
    %v189 = vsel %vm186, %v185, %v178
    %v194 = vsel %vm186, %v178, %v181
    %s195 = scalar_lea.vmem [#allocation7], 4
    %v196 = vld [vmem:[%s195] sm:$0xf]
    %v198 = vlaneseq
    %v199 = vshrl.u32 %v198, 7
    %v200 = vsub.s32 0, %v199
    %v201 = vrot.slane %v196, %v200
    %v202 = vlaneseq
    %v203 = vshrl.u32 %v202, 7
    %v204 = vsub.s32 1, %v203
    %v205 = vrot.slane %v196, %v204
    %v206 = vlaneseq
    %v207 = vshrl.u32 %v206, 7
    %v208 = vsub.s32 2, %v207
    %v209 = vrot.slane %v196, %v208
    %v210 = vlaneseq
    %v211 = vshrl.u32 %v210, 7
    %v212 = vsub.s32 3, %v211
    %v213 = vrot.slane %v196, %v212
    %v218 = vmul.f32 %v194, %v201
    %v219 = vmul.f32 %v187, %v205
    %v220 = vmul.f32 %v188, %v209
    %v221 = vmul.f32 %v189, %v213
    %222 = vrot.lane.b32.xlu0 %v126, 15
    %v223 = vpop.permute.xlu0 %222
    %225 = vrot.lane.b32.xlu0 %v120, 15
    %v226 = vpop.permute.xlu0 %225
    %227 = vrot.lane.b32.xlu0 %v122, 15
    %v228 = vpop.permute.xlu0 %227
    %229 = vrot.lane.b32.xlu0 %v124, 15
    %v230 = vpop.permute.xlu0 %229
    %vm231 = vcmask 121856
    %v232 = vsel %vm231, %v226, %v228
    %v233 = vsel %vm231, %v228, %v230
    %v234 = vsel %vm231, %v230, %v223
    %v239 = vsel %vm231, %v223, %v226
    %s240 = scalar_lea.vmem [#allocation7], 8
    %v241 = vld [vmem:[%s240] sm:$0xf]
    %v243 = vlaneseq
    %v244 = vshrl.u32 %v243, 7
    %v245 = vsub.s32 0, %v244
    %v246 = vrot.slane %v241, %v245
    %v247 = vlaneseq
    %v248 = vshrl.u32 %v247, 7
    %v249 = vsub.s32 1, %v248
    %v250 = vrot.slane %v241, %v249
    %v251 = vlaneseq
    %v252 = vshrl.u32 %v251, 7
    %v253 = vsub.s32 2, %v252
    %v254 = vrot.slane %v241, %v253
    %v255 = vlaneseq
    %v256 = vshrl.u32 %v255, 7
    %v257 = vsub.s32 3, %v256
    %v258 = vrot.slane %v241, %v257
    %v263 = vmul.f32 %v239, %v246
    %v264 = vmul.f32 %v232, %v250
    %v265 = vmul.f32 %v233, %v254
    %v266 = vmul.f32 %v234, %v258
    %267 = vrot.lane.b32.xlu0 %v126, 1
    %v268 = vpop.permute.xlu0 %267
    %270 = vrot.lane.b32.xlu0 %v120, 1
    %v271 = vpop.permute.xlu0 %270
    %272 = vrot.lane.b32.xlu0 %v122, 1
    %v273 = vpop.permute.xlu0 %272
    %274 = vrot.lane.b32.xlu0 %v124, 1
    %v275 = vpop.permute.xlu0 %274
    %vm276 = vcmask 7168
    %v277 = vsel %vm276, %v271, %v273
    %v278 = vsel %vm276, %v273, %v275
    %v279 = vsel %vm276, %v275, %v268
    %v284 = vsel %vm276, %v268, %v271
    %s285 = scalar_lea.vmem [#allocation7], 12
    %v286 = vld [vmem:[%s285] sm:$0xf]
    %v288 = vlaneseq
    %v289 = vshrl.u32 %v288, 7
    %v290 = vsub.s32 0, %v289
    %v291 = vrot.slane %v286, %v290
    %v292 = vlaneseq
    %v293 = vshrl.u32 %v292, 7
    %v294 = vsub.s32 1, %v293
    %v295 = vrot.slane %v286, %v294
    %v296 = vlaneseq
    %v297 = vshrl.u32 %v296, 7
    %v298 = vsub.s32 2, %v297
    %v299 = vrot.slane %v286, %v298
    %v300 = vlaneseq
    %v301 = vshrl.u32 %v300, 7
    %v302 = vsub.s32 3, %v301
    %v303 = vrot.slane %v286, %v302
    %v308 = vmul.f32 %v284, %v291
    %v309 = vmul.f32 %v277, %v295
    %v310 = vmul.f32 %v278, %v299
    %v311 = vmul.f32 %v279, %v303
    %312 = vrot.lane.b32.xlu0 %v120, 127
    %v313 = vpop.permute.xlu0 %312
    %314 = vrot.lane.b32.xlu0 %v122, 127
    %v315 = vpop.permute.xlu0 %314
    %316 = vrot.lane.b32.xlu0 %v124, 127
    %v317 = vpop.permute.xlu0 %316
    %318 = vrot.lane.b32.xlu0 %v126, 127
    %v319 = vpop.permute.xlu0 %318
    %vm320 = vcmask 1039360
    %v321 = vsel %vm320, %v313, %v315
    %v322 = vsel %vm320, %v315, %v317
    %v323 = vsel %vm320, %v317, %v319
    %v329 = vsel %vm320, %v319, %v313
    %s330 = scalar_lea.vmem [#allocation7], 20
    %v331 = vld [vmem:[%s330] sm:$0xf]
    %v333 = vlaneseq
    %v334 = vshrl.u32 %v333, 7
    %v335 = vsub.s32 0, %v334
    %v336 = vrot.slane %v331, %v335
    %v337 = vlaneseq
    %v338 = vshrl.u32 %v337, 7
    %v339 = vsub.s32 1, %v338
    %v340 = vrot.slane %v331, %v339
    %v341 = vlaneseq
    %v342 = vshrl.u32 %v341, 7
    %v343 = vsub.s32 2, %v342
    %v344 = vrot.slane %v331, %v343
    %v345 = vlaneseq
    %v346 = vshrl.u32 %v345, 7
    %v347 = vsub.s32 3, %v346
    %v348 = vrot.slane %v331, %v347
    %v353 = vmul.f32 %v321, %v336
    %v354 = vmul.f32 %v322, %v340
    %v355 = vmul.f32 %v323, %v344
    %v356 = vmul.f32 %v329, %v348
    %357 = vrot.lane.b32.xlu0 %v120, 113
    %v358 = vpop.permute.xlu0 %357
    %359 = vrot.lane.b32.xlu0 %v122, 113
    %v360 = vpop.permute.xlu0 %359
    %361 = vrot.lane.b32.xlu0 %v124, 113
    %v362 = vpop.permute.xlu0 %361
    %363 = vrot.lane.b32.xlu0 %v126, 113
    %v364 = vpop.permute.xlu0 %363
    %vm365 = vcmask 924672
    %v366 = vsel %vm365, %v358, %v360
    %v367 = vsel %vm365, %v360, %v362
    %v368 = vsel %vm365, %v362, %v364
    %v374 = vsel %vm365, %v364, %v358
    %s375 = scalar_lea.vmem [#allocation7], 24
    %v376 = vld [vmem:[%s375] sm:$0xf]
    %v378 = vlaneseq
    %v379 = vshrl.u32 %v378, 7
    %v380 = vsub.s32 0, %v379
    %v381 = vrot.slane %v376, %v380
    %v382 = vlaneseq
    %v383 = vshrl.u32 %v382, 7
    %v384 = vsub.s32 1, %v383
    %v385 = vrot.slane %v376, %v384
    %v386 = vlaneseq
    %v387 = vshrl.u32 %v386, 7
    %v388 = vsub.s32 2, %v387
    %v389 = vrot.slane %v376, %v388
    %v390 = vlaneseq
    %v391 = vshrl.u32 %v390, 7
    %v392 = vsub.s32 3, %v391
    %v393 = vrot.slane %v376, %v392
    %v398 = vmul.f32 %v366, %v381
    %v399 = vmul.f32 %v367, %v385
    %v400 = vmul.f32 %v368, %v389
    %v401 = vmul.f32 %v374, %v393
    %402 = vrot.lane.b32.xlu0 %v120, 112
    %v403 = vpop.permute.xlu0 %402
    %404 = vrot.lane.b32.xlu0 %v122, 112
    %v405 = vpop.permute.xlu0 %404
    %406 = vrot.lane.b32.xlu0 %v124, 112
    %v407 = vpop.permute.xlu0 %406
    %408 = vrot.lane.b32.xlu0 %v126, 112
    %v409 = vpop.permute.xlu0 %408
    %vm410 = vcmask 916480
    %v411 = vsel %vm410, %v403, %v405
    %v412 = vsel %vm410, %v405, %v407
    %v413 = vsel %vm410, %v407, %v409
    %v419 = vsel %vm410, %v409, %v403
    %s420 = scalar_lea.vmem [#allocation7], 28
    %v421 = vld [vmem:[%s420] sm:$0xf]
    %v423 = vlaneseq
    %v424 = vshrl.u32 %v423, 7
    %v425 = vsub.s32 0, %v424
    %v426 = vrot.slane %v421, %v425
    %v427 = vlaneseq
    %v428 = vshrl.u32 %v427, 7
    %v429 = vsub.s32 1, %v428
    %v430 = vrot.slane %v421, %v429
    %v431 = vlaneseq
    %v432 = vshrl.u32 %v431, 7
    %v433 = vsub.s32 2, %v432
    %v434 = vrot.slane %v421, %v433
    %v435 = vlaneseq
    %v436 = vshrl.u32 %v435, 7
    %v437 = vsub.s32 3, %v436
    %v438 = vrot.slane %v421, %v437
    %v443 = vmul.f32 %v411, %v426
    %v444 = vmul.f32 %v412, %v430
    %v445 = vmul.f32 %v413, %v434
    %v446 = vmul.f32 %v419, %v438
    %447 = vrot.lane.b32.xlu0 %v120, 111
    %v448 = vpop.permute.xlu0 %447
    %449 = vrot.lane.b32.xlu0 %v122, 111
    %v450 = vpop.permute.xlu0 %449
    %451 = vrot.lane.b32.xlu0 %v124, 111
    %v452 = vpop.permute.xlu0 %451
    %453 = vrot.lane.b32.xlu0 %v126, 111
    %v454 = vpop.permute.xlu0 %453
    %vm455 = vcmask 908288
    %v456 = vsel %vm455, %v448, %v450
    %v457 = vsel %vm455, %v450, %v452
    %v458 = vsel %vm455, %v452, %v454
    %v464 = vsel %vm455, %v454, %v448
    %s465 = scalar_lea.vmem [#allocation7], 32
    %v466 = vld [vmem:[%s465] sm:$0xf]
    %v468 = vlaneseq
    %v469 = vshrl.u32 %v468, 7
    %v470 = vsub.s32 0, %v469
    %v471 = vrot.slane %v466, %v470
    %v472 = vlaneseq
    %v473 = vshrl.u32 %v472, 7
    %v474 = vsub.s32 1, %v473
    %v475 = vrot.slane %v466, %v474
    %v476 = vlaneseq
    %v477 = vshrl.u32 %v476, 7
    %v478 = vsub.s32 2, %v477
    %v479 = vrot.slane %v466, %v478
    %v480 = vlaneseq
    %v481 = vshrl.u32 %v480, 7
    %v482 = vsub.s32 3, %v481
    %v483 = vrot.slane %v466, %v482
    %v488 = vmul.f32 %v456, %v471
    %v489 = vmul.f32 %v457, %v475
    %v490 = vmul.f32 %v458, %v479
    %v491 = vmul.f32 %v464, %v483
    %vm492 = vcmask 588800
    %v494 = vsel %vm492, %v127, 0
    %v497 = vsel %vm492, %v128, 0
    %499 = vmatprep.subr.mxu0 %v174
    %500 = vmatpush1.msra.mxu0 %v173
    %501 = vmatprep.subr.mxu0 %v219
    %502 = vmatpush1.msra.mxu0 %v218
    %503 = vmatprep.subr.mxu0 %v264
    %504 = vmatpush1.msra.mxu0 %v263
    %505 = vmatprep.subr.mxu0 %v309
    %506 = vmatpush1.msra.mxu0 %v308
    %507 = vmatprep.subr.mxu0 %v122
    %508 = vmatpush1.msra.mxu0 %v120
    %509 = vmatprep.subr.mxu0 %v354
    %510 = vmatpush1.msra.mxu0 %v353
    %511 = vmatprep.subr.mxu0 %v399
    %512 = vmatpush1.msra.mxu0 %v398
    %513 = vmatprep.subr.mxu0 %v444
    %514 = vmatpush1.msra.mxu0 %v443
    %515 = vmatprep.subr.mxu0 %v489
    %516 = vmatpush1.msra.mxu0 %v488
    %517 = vmatprep.subr.mxu0 0.0
    %518 = vmatpush1.msra.mxu0 0.0
    %519 = vmatprep.subr.mxu0 0.0
    %520 = vmatpush1.msra.mxu0 0.0
    %521 = vmatprep.subr.mxu0 0.0
    %522 = vmatpush1.msra.mxu0 0.0
    %523 = vmatprep.subr.mxu0 0.0
    %524 = vmatpush1.msra.mxu0 0.0
    %525 = vmatprep.subr.mxu0 0.0
    %526 = vmatpush1.msra.mxu0 0.0
    %527 = vmatprep.subr.mxu0 0.0
    %528 = vmatpush1.msra.mxu0 0.0
    %529 = vmatprep.subr.mxu0 0.0
    %530 = vmatpush1.msra.mxu0 0.0
    %531 = vmatprep.subr.mxu0 0.0
    %532 = vmatpush1.msra.mxu0 0.0
    %533 = vmatprep.subr.mxu0 0.0
    %534 = vmatpush1.msra.mxu0 0.0
    %535 = vmatprep.subr.mxu0 0.0
    %536 = vmatpush1.msra.mxu0 0.0
    %537 = vmatprep.subr.mxu0 0.0
    %538 = vmatpush1.msra.mxu0 0.0
    %539 = vmatprep.subr.mxu0 0.0
    %540 = vmatpush1.msra.mxu0 0.0
    %541 = vmatprep.subr.mxu0 0.0
    %542 = vmatpush1.msra.mxu0 0.0
    %543 = vmatprep.subr.mxu0 0.0
    %544 = vmatpush1.msra.mxu0 0.0
    %545 = vmatprep.subr.mxu0 0.0
    %546 = vmatpush1.msra.mxu0 0.0
    %547 = vmatprep.subr.mxu0 0.0
    %548 = vmatpush1.msra.mxu0 0.0
    %549 = vmatprep.subr.mxu0 0.0
    %550 = vmatpush1.msra.mxu0 0.0
    %551 = vmatprep.subr.mxu0 0.0
    %552 = vmatpush1.msra.mxu0 0.0
    %553 = vmatprep.subr.mxu0 0.0
    %554 = vmatpush1.msra.mxu0 0.0
    %555 = vmatprep.subr.mxu0 0.0
    %556 = vmatpush1.msra.mxu0 0.0
    %557 = vmatprep.subr.mxu0 0.0
    %558 = vmatpush1.msra.mxu0 0.0
    %559 = vmatprep.subr.mxu0 0.0
    %560 = vmatpush1.msra.mxu0 0.0
    %561 = vmatprep.subr.mxu0 0.0
    %562 = vmatpush1.msra.mxu0 0.0
    %563 = vmatprep.mubr.f32.mxu0 0.0
    %564 = vmatmul.mubr.f32.gmra.mrb[0].mxu0 %v494
    %v565 = vpop.f32.mrb[0].mxu0
    %v566 = vadd.f32 0.0, %v565
    %v567 = vpop.f32.mrb[0].mxu0
    %v568 = vadd.f32 0.0, %v567
    %569 = vmatprep.mubr.f32.mxu0 0.0
    %570 = vmatmul.mubr.f32.gmra.mrb[0].mxu0 %v497
    %v571 = vpop.f32.mrb[0].mxu0
    %v572 = vadd.f32 0.0, %v571
    %v573 = vpop.f32.mrb[0].mxu0
    %v574 = vadd.f32 0.0, %v573
    %575 = vdwg.mxu0
    %576 = vmatprep.subr.mxu0 %v176
    %577 = vmatpush1.msra.mxu0 %v175
    %578 = vmatprep.subr.mxu0 %v221
    %579 = vmatpush1.msra.mxu0 %v220
    %580 = vmatprep.subr.mxu0 %v266
    %581 = vmatpush1.msra.mxu0 %v265
    %582 = vmatprep.subr.mxu0 %v311
    %583 = vmatpush1.msra.mxu0 %v310
    %584 = vmatprep.subr.mxu0 %v126
    %585 = vmatpush1.msra.mxu0 %v124
    %586 = vmatprep.subr.mxu0 %v356
    %587 = vmatpush1.msra.mxu0 %v355
    %588 = vmatprep.subr.mxu0 %v401
    %589 = vmatpush1.msra.mxu0 %v400
    %590 = vmatprep.subr.mxu0 %v446
    %591 = vmatpush1.msra.mxu0 %v445
    %592 = vmatprep.subr.mxu0 %v491
    %593 = vmatpush1.msra.mxu0 %v490
    %594 = vmatprep.subr.mxu0 0.0
    %595 = vmatpush1.msra.mxu0 0.0
    %596 = vmatprep.subr.mxu0 0.0
    %597 = vmatpush1.msra.mxu0 0.0
    %598 = vmatprep.subr.mxu0 0.0
    %599 = vmatpush1.msra.mxu0 0.0
    %600 = vmatprep.subr.mxu0 0.0
    %601 = vmatpush1.msra.mxu0 0.0
    %602 = vmatprep.subr.mxu0 0.0
    %603 = vmatpush1.msra.mxu0 0.0
    %604 = vmatprep.subr.mxu0 0.0
    %605 = vmatpush1.msra.mxu0 0.0
    %606 = vmatprep.subr.mxu0 0.0
    %607 = vmatpush1.msra.mxu0 0.0
    %608 = vmatprep.subr.mxu0 0.0
    %609 = vmatpush1.msra.mxu0 0.0
    %610 = vmatprep.subr.mxu0 0.0
    %611 = vmatpush1.msra.mxu0 0.0
    %612 = vmatprep.subr.mxu0 0.0
    %613 = vmatpush1.msra.mxu0 0.0
    %614 = vmatprep.subr.mxu0 0.0
    %615 = vmatpush1.msra.mxu0 0.0
    %616 = vmatprep.subr.mxu0 0.0
    %617 = vmatpush1.msra.mxu0 0.0
    %618 = vmatprep.subr.mxu0 0.0
    %619 = vmatpush1.msra.mxu0 0.0
    %620 = vmatprep.subr.mxu0 0.0
    %621 = vmatpush1.msra.mxu0 0.0
    %622 = vmatprep.subr.mxu0 0.0
    %623 = vmatpush1.msra.mxu0 0.0
    %624 = vmatprep.subr.mxu0 0.0
    %625 = vmatpush1.msra.mxu0 0.0
    %626 = vmatprep.subr.mxu0 0.0
    %627 = vmatpush1.msra.mxu0 0.0
    %628 = vmatprep.subr.mxu0 0.0
    %629 = vmatpush1.msra.mxu0 0.0
    %630 = vmatprep.subr.mxu0 0.0
    %631 = vmatpush1.msra.mxu0 0.0
    %632 = vmatprep.subr.mxu0 0.0
    %633 = vmatpush1.msra.mxu0 0.0
    %634 = vmatprep.subr.mxu0 0.0
    %635 = vmatpush1.msra.mxu0 0.0
    %636 = vmatprep.subr.mxu0 0.0
    %637 = vmatpush1.msra.mxu0 0.0
    %638 = vmatprep.subr.mxu0 0.0
    %639 = vmatpush1.msra.mxu0 0.0
    %640 = vmatprep.mubr.f32.mxu0 0.0
    %641 = vmatmul.mubr.f32.gmra.mrb[0].mxu0 %v494
    %v642 = vpop.f32.mrb[0].mxu0
    %v643 = vadd.f32 0.0, %v642
    %v644 = vpop.f32.mrb[0].mxu0
    %v645 = vadd.f32 0.0, %v644
    %646 = vmatprep.mubr.f32.mxu0 0.0
    %647 = vmatmul.mubr.f32.gmra.mrb[0].mxu0 %v497
    %v648 = vpop.f32.mrb[0].mxu0
    %v649 = vadd.f32 0.0, %v648
    %v650 = vpop.f32.mrb[0].mxu0
    %v651 = vadd.f32 0.0, %v650
    %652 = vdwg.mxu0
    %v653 = vmax.f32 %v566, 0.0
    %v654 = vmax.f32 %v568, 0.0
    %v655 = vmax.f32 %v643, 0.0
    %v656 = vmax.f32 %v645, 0.0
    %v657 = vmax.f32 %v572, 0.0
    %v658 = vmax.f32 %v574, 0.0
    %v659 = vmax.f32 %v649, 0.0
    %v660 = vmax.f32 %v651, 0.0
    %v661 = vld [vmem:[#allocation8] sm:$0x3f]
    %v662 = vld [vmem:[#allocation8 + $0x8] sm:$0x3f]
    %665 = vrot.lane.b32.xlu0 %v656, 17
    %v666 = vpop.permute.xlu0 %665
    %667 = vrot.lane.b32.xlu0 %v660, 17
    %v668 = vpop.permute.xlu0 %667
    %677 = vrot.lane.b32.xlu0 %v653, 17
    %v678 = vpop.permute.xlu0 %677
    %679 = vrot.lane.b32.xlu0 %v654, 17
    %v680 = vpop.permute.xlu0 %679
    %681 = vrot.lane.b32.xlu0 %v655, 17
    %v682 = vpop.permute.xlu0 %681
    %683 = vrot.lane.b32.xlu0 %v657, 17
    %v684 = vpop.permute.xlu0 %683
    %685 = vrot.lane.b32.xlu0 %v658, 17
    %v686 = vpop.permute.xlu0 %685
    %687 = vrot.lane.b32.xlu0 %v659, 17
    %v688 = vpop.permute.xlu0 %687
    %v689 = vsel %vm142, %v678, %v680
    %v690 = vsel %vm142, %v680, %v682
    %v691 = vsel %vm142, %v682, %v666
    %v692 = vsel %vm142, %v684, %v686
    %v693 = vsel %vm142, %v686, %v688
    %v694 = vsel %vm142, %v688, %v668
    %v703 = vsel %vm142, %v666, %v678
    %v704 = vsel %vm142, %v668, %v684
    %v705 = vmul.f32 %v703, %v156
    %v706 = vmul.f32 %v689, %v160
    %v707 = vmul.f32 %v690, %v164
    %v708 = vmul.f32 %v691, %v168
    %v709 = vmul.f32 %v704, %v156
    %v710 = vmul.f32 %v692, %v160
    %v711 = vmul.f32 %v693, %v164
    %v712 = vmul.f32 %v694, %v168
    %713 = vrot.lane.b32.xlu0 %v656, 16
    %v714 = vpop.permute.xlu0 %713
    %715 = vrot.lane.b32.xlu0 %v660, 16
    %v716 = vpop.permute.xlu0 %715
    %719 = vrot.lane.b32.xlu0 %v653, 16
    %v720 = vpop.permute.xlu0 %719
    %721 = vrot.lane.b32.xlu0 %v654, 16
    %v722 = vpop.permute.xlu0 %721
    %723 = vrot.lane.b32.xlu0 %v655, 16
    %v724 = vpop.permute.xlu0 %723
    %725 = vrot.lane.b32.xlu0 %v657, 16
    %v726 = vpop.permute.xlu0 %725
    %727 = vrot.lane.b32.xlu0 %v658, 16
    %v728 = vpop.permute.xlu0 %727
    %729 = vrot.lane.b32.xlu0 %v659, 16
    %v730 = vpop.permute.xlu0 %729
    %v731 = vsel %vm186, %v720, %v722
    %v732 = vsel %vm186, %v722, %v724
    %v733 = vsel %vm186, %v724, %v714
    %v734 = vsel %vm186, %v726, %v728
    %v735 = vsel %vm186, %v728, %v730
    %v736 = vsel %vm186, %v730, %v716
    %v745 = vsel %vm186, %v714, %v720
    %v746 = vsel %vm186, %v716, %v726
    %v747 = vmul.f32 %v745, %v201
    %v748 = vmul.f32 %v731, %v205
    %v749 = vmul.f32 %v732, %v209
    %v750 = vmul.f32 %v733, %v213
    %v751 = vmul.f32 %v746, %v201
    %v752 = vmul.f32 %v734, %v205
    %v753 = vmul.f32 %v735, %v209
    %v754 = vmul.f32 %v736, %v213
    %755 = vrot.lane.b32.xlu0 %v656, 15
    %v756 = vpop.permute.xlu0 %755
    %757 = vrot.lane.b32.xlu0 %v660, 15
    %v758 = vpop.permute.xlu0 %757
    %761 = vrot.lane.b32.xlu0 %v653, 15
    %v762 = vpop.permute.xlu0 %761
    %763 = vrot.lane.b32.xlu0 %v654, 15
    %v764 = vpop.permute.xlu0 %763
    %765 = vrot.lane.b32.xlu0 %v655, 15
    %v766 = vpop.permute.xlu0 %765
    %767 = vrot.lane.b32.xlu0 %v657, 15
    %v768 = vpop.permute.xlu0 %767
    %769 = vrot.lane.b32.xlu0 %v658, 15
    %v770 = vpop.permute.xlu0 %769
    %771 = vrot.lane.b32.xlu0 %v659, 15
    %v772 = vpop.permute.xlu0 %771
    %v773 = vsel %vm231, %v762, %v764
    %v774 = vsel %vm231, %v764, %v766
    %v775 = vsel %vm231, %v766, %v756
    %v776 = vsel %vm231, %v768, %v770
    %v777 = vsel %vm231, %v770, %v772
    %v778 = vsel %vm231, %v772, %v758
    %v787 = vsel %vm231, %v756, %v762
    %v788 = vsel %vm231, %v758, %v768
    %v789 = vmul.f32 %v787, %v246
    %v790 = vmul.f32 %v773, %v250
    %v791 = vmul.f32 %v774, %v254
    %v792 = vmul.f32 %v775, %v258
    %v793 = vmul.f32 %v788, %v246
    %v794 = vmul.f32 %v776, %v250
    %v795 = vmul.f32 %v777, %v254
    %v796 = vmul.f32 %v778, %v258
    %797 = vrot.lane.b32.xlu0 %v656, 1
    %v798 = vpop.permute.xlu0 %797
    %799 = vrot.lane.b32.xlu0 %v660, 1
    %v800 = vpop.permute.xlu0 %799
    %803 = vrot.lane.b32.xlu0 %v653, 1
    %v804 = vpop.permute.xlu0 %803
    %805 = vrot.lane.b32.xlu0 %v654, 1
    %v806 = vpop.permute.xlu0 %805
    %807 = vrot.lane.b32.xlu0 %v655, 1
    %v808 = vpop.permute.xlu0 %807
    %809 = vrot.lane.b32.xlu0 %v657, 1
    %v810 = vpop.permute.xlu0 %809
    %811 = vrot.lane.b32.xlu0 %v658, 1
    %v812 = vpop.permute.xlu0 %811
    %813 = vrot.lane.b32.xlu0 %v659, 1
    %v814 = vpop.permute.xlu0 %813
    %v815 = vsel %vm276, %v804, %v806
    %v816 = vsel %vm276, %v806, %v808
    %v817 = vsel %vm276, %v808, %v798
    %v818 = vsel %vm276, %v810, %v812
    %v819 = vsel %vm276, %v812, %v814
    %v820 = vsel %vm276, %v814, %v800
    %v829 = vsel %vm276, %v798, %v804
    %v830 = vsel %vm276, %v800, %v810
    %v831 = vmul.f32 %v829, %v291
    %v832 = vmul.f32 %v815, %v295
    %v833 = vmul.f32 %v816, %v299
    %v834 = vmul.f32 %v817, %v303
    %v835 = vmul.f32 %v830, %v291
    %v836 = vmul.f32 %v818, %v295
    %v837 = vmul.f32 %v819, %v299
    %v838 = vmul.f32 %v820, %v303
    %839 = vrot.lane.b32.xlu0 %v653, 127
    %v840 = vpop.permute.xlu0 %839
    %841 = vrot.lane.b32.xlu0 %v654, 127
    %v842 = vpop.permute.xlu0 %841
    %843 = vrot.lane.b32.xlu0 %v655, 127
    %v844 = vpop.permute.xlu0 %843
    %845 = vrot.lane.b32.xlu0 %v656, 127
    %v846 = vpop.permute.xlu0 %845
    %847 = vrot.lane.b32.xlu0 %v657, 127
    %v848 = vpop.permute.xlu0 %847
    %849 = vrot.lane.b32.xlu0 %v658, 127
    %v850 = vpop.permute.xlu0 %849
    %851 = vrot.lane.b32.xlu0 %v659, 127
    %v852 = vpop.permute.xlu0 %851
    %853 = vrot.lane.b32.xlu0 %v660, 127
    %v854 = vpop.permute.xlu0 %853
    %v855 = vsel %vm320, %v840, %v842
    %v856 = vsel %vm320, %v842, %v844
    %v857 = vsel %vm320, %v844, %v846
    %v858 = vsel %vm320, %v848, %v850
    %v859 = vsel %vm320, %v850, %v852
    %v860 = vsel %vm320, %v852, %v854
    %v871 = vsel %vm320, %v846, %v840
    %v872 = vsel %vm320, %v854, %v848
    %v873 = vmul.f32 %v855, %v336
    %v874 = vmul.f32 %v856, %v340
    %v875 = vmul.f32 %v857, %v344
    %v876 = vmul.f32 %v871, %v348
    %v877 = vmul.f32 %v858, %v336
    %v878 = vmul.f32 %v859, %v340
    %v879 = vmul.f32 %v860, %v344
    %v880 = vmul.f32 %v872, %v348
    %881 = vrot.lane.b32.xlu0 %v653, 113
    %v882 = vpop.permute.xlu0 %881
    %883 = vrot.lane.b32.xlu0 %v654, 113
    %v884 = vpop.permute.xlu0 %883
    %885 = vrot.lane.b32.xlu0 %v655, 113
    %v886 = vpop.permute.xlu0 %885
    %887 = vrot.lane.b32.xlu0 %v656, 113
    %v888 = vpop.permute.xlu0 %887
    %889 = vrot.lane.b32.xlu0 %v657, 113
    %v890 = vpop.permute.xlu0 %889
    %891 = vrot.lane.b32.xlu0 %v658, 113
    %v892 = vpop.permute.xlu0 %891
    %893 = vrot.lane.b32.xlu0 %v659, 113
    %v894 = vpop.permute.xlu0 %893
    %895 = vrot.lane.b32.xlu0 %v660, 113
    %v896 = vpop.permute.xlu0 %895
    %v897 = vsel %vm365, %v882, %v884
    %v898 = vsel %vm365, %v884, %v886
    %v899 = vsel %vm365, %v886, %v888
    %v900 = vsel %vm365, %v890, %v892
    %v901 = vsel %vm365, %v892, %v894
    %v902 = vsel %vm365, %v894, %v896
    %v913 = vsel %vm365, %v888, %v882
    %v914 = vsel %vm365, %v896, %v890
    %v915 = vmul.f32 %v897, %v381
    %v916 = vmul.f32 %v898, %v385
    %v917 = vmul.f32 %v899, %v389
    %v918 = vmul.f32 %v913, %v393
    %v919 = vmul.f32 %v900, %v381
    %v920 = vmul.f32 %v901, %v385
    %v921 = vmul.f32 %v902, %v389
    %v922 = vmul.f32 %v914, %v393
    %923 = vrot.lane.b32.xlu0 %v653, 112
    %v924 = vpop.permute.xlu0 %923
    %925 = vrot.lane.b32.xlu0 %v654, 112
    %v926 = vpop.permute.xlu0 %925
    %927 = vrot.lane.b32.xlu0 %v655, 112
    %v928 = vpop.permute.xlu0 %927
    %929 = vrot.lane.b32.xlu0 %v656, 112
    %v930 = vpop.permute.xlu0 %929
    %931 = vrot.lane.b32.xlu0 %v657, 112
    %v932 = vpop.permute.xlu0 %931
    %933 = vrot.lane.b32.xlu0 %v658, 112
    %v934 = vpop.permute.xlu0 %933
    %935 = vrot.lane.b32.xlu0 %v659, 112
    %v936 = vpop.permute.xlu0 %935
    %937 = vrot.lane.b32.xlu0 %v660, 112
    %v938 = vpop.permute.xlu0 %937
    %v939 = vsel %vm410, %v924, %v926
    %v940 = vsel %vm410, %v926, %v928
    %v941 = vsel %vm410, %v928, %v930
    %v942 = vsel %vm410, %v932, %v934
    %v943 = vsel %vm410, %v934, %v936
    %v944 = vsel %vm410, %v936, %v938
    %v955 = vsel %vm410, %v930, %v924
    %v956 = vsel %vm410, %v938, %v932
    %v957 = vmul.f32 %v939, %v426
    %v958 = vmul.f32 %v940, %v430
    %v959 = vmul.f32 %v941, %v434
    %v960 = vmul.f32 %v955, %v438
    %v961 = vmul.f32 %v942, %v426
    %v962 = vmul.f32 %v943, %v430
    %v963 = vmul.f32 %v944, %v434
    %v964 = vmul.f32 %v956, %v438
    %965 = vrot.lane.b32.xlu0 %v653, 111
    %v966 = vpop.permute.xlu0 %965
    %967 = vrot.lane.b32.xlu0 %v654, 111
    %v968 = vpop.permute.xlu0 %967
    %969 = vrot.lane.b32.xlu0 %v655, 111
    %v970 = vpop.permute.xlu0 %969
    %971 = vrot.lane.b32.xlu0 %v656, 111
    %v972 = vpop.permute.xlu0 %971
    %973 = vrot.lane.b32.xlu0 %v657, 111
    %v974 = vpop.permute.xlu0 %973
    %975 = vrot.lane.b32.xlu0 %v658, 111
    %v976 = vpop.permute.xlu0 %975
    %977 = vrot.lane.b32.xlu0 %v659, 111
    %v978 = vpop.permute.xlu0 %977
    %979 = vrot.lane.b32.xlu0 %v660, 111
    %v980 = vpop.permute.xlu0 %979
    %v981 = vsel %vm455, %v966, %v968
    %v982 = vsel %vm455, %v968, %v970
    %v983 = vsel %vm455, %v970, %v972
    %v984 = vsel %vm455, %v974, %v976
    %v985 = vsel %vm455, %v976, %v978
    %v986 = vsel %vm455, %v978, %v980
    %v997 = vsel %vm455, %v972, %v966
    %v998 = vsel %vm455, %v980, %v974
    %v999 = vmul.f32 %v981, %v471
    %v1000 = vmul.f32 %v982, %v475
    %v1001 = vmul.f32 %v983, %v479
    %v1002 = vmul.f32 %v997, %v483
    %v1003 = vmul.f32 %v984, %v471
    %v1004 = vmul.f32 %v985, %v475
    %v1005 = vmul.f32 %v986, %v479
    %v1006 = vmul.f32 %v998, %v483
    %v1008 = vsel %vm186, %v662, 0
    %1010 = vmatprep.subr.mxu0 %v706
    %1011 = vmatpush1.msra.mxu0 %v705
    %1012 = vmatprep.subr.mxu0 %v710
    %1013 = vmatpush1.msra.mxu0 %v709
    %1014 = vmatprep.subr.mxu0 %v748
    %1015 = vmatpush1.msra.mxu0 %v747
    %1016 = vmatprep.subr.mxu0 %v752
    %1017 = vmatpush1.msra.mxu0 %v751
    %1018 = vmatprep.subr.mxu0 %v790
    %1019 = vmatpush1.msra.mxu0 %v789
    %1020 = vmatprep.subr.mxu0 %v794
    %1021 = vmatpush1.msra.mxu0 %v793
    %1022 = vmatprep.subr.mxu0 %v832
    %1023 = vmatpush1.msra.mxu0 %v831
    %1024 = vmatprep.subr.mxu0 %v836
    %1025 = vmatpush1.msra.mxu0 %v835
    %1026 = vmatprep.subr.mxu0 %v654
    %1027 = vmatpush1.msra.mxu0 %v653
    %1028 = vmatprep.subr.mxu0 %v658
    %1029 = vmatpush1.msra.mxu0 %v657
    %1030 = vmatprep.subr.mxu0 %v874
    %1031 = vmatpush1.msra.mxu0 %v873
    %1032 = vmatprep.subr.mxu0 %v878
    %1033 = vmatpush1.msra.mxu0 %v877
    %1034 = vmatprep.subr.mxu0 %v916
    %1035 = vmatpush1.msra.mxu0 %v915
    %1036 = vmatprep.subr.mxu0 %v920
    %1037 = vmatpush1.msra.mxu0 %v919
    %1038 = vmatprep.subr.mxu0 %v958
    %1039 = vmatpush1.msra.mxu0 %v957
    %1040 = vmatprep.subr.mxu0 %v962
    %1041 = vmatpush1.msra.mxu0 %v961
    %1042 = vmatprep.subr.mxu0 %v1000
    %1043 = vmatpush1.msra.mxu0 %v999
    %1044 = vmatprep.subr.mxu0 %v1004
    %1045 = vmatpush1.msra.mxu0 %v1003
    %1046 = vmatprep.subr.mxu0 0.0
    %1047 = vmatpush1.msra.mxu0 0.0
    %1048 = vmatprep.subr.mxu0 0.0
    %1049 = vmatpush1.msra.mxu0 0.0
    %1050 = vmatprep.subr.mxu0 0.0
    %1051 = vmatpush1.msra.mxu0 0.0
    %1052 = vmatprep.subr.mxu0 0.0
    %1053 = vmatpush1.msra.mxu0 0.0
    %1054 = vmatprep.subr.mxu0 0.0
    %1055 = vmatpush1.msra.mxu0 0.0
    %1056 = vmatprep.subr.mxu0 0.0
    %1057 = vmatpush1.msra.mxu0 0.0
    %1058 = vmatprep.subr.mxu0 0.0
    %1059 = vmatpush1.msra.mxu0 0.0
    %1060 = vmatprep.subr.mxu0 0.0
    %1061 = vmatpush1.msra.mxu0 0.0
    %1062 = vmatprep.subr.mxu0 0.0
    %1063 = vmatpush1.msra.mxu0 0.0
    %1064 = vmatprep.subr.mxu0 0.0
    %1065 = vmatpush1.msra.mxu0 0.0
    %1066 = vmatprep.subr.mxu0 0.0
    %1067 = vmatpush1.msra.mxu0 0.0
    %1068 = vmatprep.subr.mxu0 0.0
    %1069 = vmatpush1.msra.mxu0 0.0
    %1070 = vmatprep.subr.mxu0 0.0
    %1071 = vmatpush1.msra.mxu0 0.0
    %1072 = vmatprep.subr.mxu0 0.0
    %1073 = vmatpush1.msra.mxu0 0.0
    %1074 = vmatprep.mubr.f32.mxu0 %v1008
    %1075 = vmatmul.mubr.f32.gmra.mrb[0].mxu0 %v661
    %v1076 = vpop.f32.mrb[0].mxu0
    %v1077 = vadd.f32 0.0, %v1076
    %v1078 = vpop.f32.mrb[0].mxu0
    %v1079 = vadd.f32 0.0, %v1078
    %1080 = vdwg.mxu0
    %1081 = vmatprep.subr.mxu0 %v708
    %1082 = vmatpush1.msra.mxu0 %v707
    %1083 = vmatprep.subr.mxu0 %v712
    %1084 = vmatpush1.msra.mxu0 %v711
    %1085 = vmatprep.subr.mxu0 %v750
    %1086 = vmatpush1.msra.mxu0 %v749
    %1087 = vmatprep.subr.mxu0 %v754
    %1088 = vmatpush1.msra.mxu0 %v753
    %1089 = vmatprep.subr.mxu0 %v792
    %1090 = vmatpush1.msra.mxu0 %v791
    %1091 = vmatprep.subr.mxu0 %v796
    %1092 = vmatpush1.msra.mxu0 %v795
    %1093 = vmatprep.subr.mxu0 %v834
    %1094 = vmatpush1.msra.mxu0 %v833
    %1095 = vmatprep.subr.mxu0 %v838
    %1096 = vmatpush1.msra.mxu0 %v837
    %1097 = vmatprep.subr.mxu0 %v656
    %1098 = vmatpush1.msra.mxu0 %v655
    %1099 = vmatprep.subr.mxu0 %v660
    %1100 = vmatpush1.msra.mxu0 %v659
    %1101 = vmatprep.subr.mxu0 %v876
    %1102 = vmatpush1.msra.mxu0 %v875
    %1103 = vmatprep.subr.mxu0 %v880
    %1104 = vmatpush1.msra.mxu0 %v879
    %1105 = vmatprep.subr.mxu0 %v918
    %1106 = vmatpush1.msra.mxu0 %v917
    %1107 = vmatprep.subr.mxu0 %v922
    %1108 = vmatpush1.msra.mxu0 %v921
    %1109 = vmatprep.subr.mxu0 %v960
    %1110 = vmatpush1.msra.mxu0 %v959
    %1111 = vmatprep.subr.mxu0 %v964
    %1112 = vmatpush1.msra.mxu0 %v963
    %1113 = vmatprep.subr.mxu0 %v1002
    %1114 = vmatpush1.msra.mxu0 %v1001
    %1115 = vmatprep.subr.mxu0 %v1006
    %1116 = vmatpush1.msra.mxu0 %v1005
    %1117 = vmatprep.subr.mxu0 0.0
    %1118 = vmatpush1.msra.mxu0 0.0
    %1119 = vmatprep.subr.mxu0 0.0
    %1120 = vmatpush1.msra.mxu0 0.0
    %1121 = vmatprep.subr.mxu0 0.0
    %1122 = vmatpush1.msra.mxu0 0.0
    %1123 = vmatprep.subr.mxu0 0.0
    %1124 = vmatpush1.msra.mxu0 0.0
    %1125 = vmatprep.subr.mxu0 0.0
    %1126 = vmatpush1.msra.mxu0 0.0
    %1127 = vmatprep.subr.mxu0 0.0
    %1128 = vmatpush1.msra.mxu0 0.0
    %1129 = vmatprep.subr.mxu0 0.0
    %1130 = vmatpush1.msra.mxu0 0.0
    %1131 = vmatprep.subr.mxu0 0.0
    %1132 = vmatpush1.msra.mxu0 0.0
    %1133 = vmatprep.subr.mxu0 0.0
    %1134 = vmatpush1.msra.mxu0 0.0
    %1135 = vmatprep.subr.mxu0 0.0
    %1136 = vmatpush1.msra.mxu0 0.0
    %1137 = vmatprep.subr.mxu0 0.0
    %1138 = vmatpush1.msra.mxu0 0.0
    %1139 = vmatprep.subr.mxu0 0.0
    %1140 = vmatpush1.msra.mxu0 0.0
    %1141 = vmatprep.subr.mxu0 0.0
    %1142 = vmatpush1.msra.mxu0 0.0
    %1143 = vmatprep.subr.mxu0 0.0
    %1144 = vmatpush1.msra.mxu0 0.0
    %1145 = vmatprep.mubr.f32.mxu0 %v1008
    %1146 = vmatmul.mubr.f32.gmra.mrb[0].mxu0 %v661
    %v1147 = vpop.f32.mrb[0].mxu0
    %v1148 = vadd.f32 0.0, %v1147
    %v1149 = vpop.f32.mrb[0].mxu0
    %v1150 = vadd.f32 0.0, %v1149
    %1151 = vdwg.mxu0
    %v1152 = vmax.f32 %v1077, 0.0
    %v1153 = vmax.f32 %v1079, 0.0
    %v1154 = vmax.f32 %v1148, 0.0
    %v1155 = vmax.f32 %v1150, 0.0
    %v1156 = vld [vmem:[%s6] sm:$0xff]
    %vm1157 = vcmask 48128
    %v1159 = vsel %vm1157, %v1156, 0
    %vm1161 = vcmask 1045504
    %v1163 = vsel %vm1161, %v1152, 0
    %v1166 = vsel %vm1161, %v1153, 0
    %v1169 = vsel %vm1161, %v1154, 0
    %v1172 = vsel %vm1161, %v1155, 0
    %1174 = vmatprep.subr.mxu0 %v1166
    %1175 = vmatpush1.msra.mxu0 %v1163
    %1176 = vmatprep.subr.mxu0 0.0
    %1177 = vmatpush1.msra.mxu0 0.0
    %1178 = vmatprep.subr.mxu0 0.0
    %1179 = vmatpush1.msra.mxu0 0.0
    %1180 = vmatprep.subr.mxu0 0.0
    %1181 = vmatpush1.msra.mxu0 0.0
    %1182 = vmatprep.subr.mxu0 0.0
    %1183 = vmatpush1.msra.mxu0 0.0
    %1184 = vmatprep.subr.mxu0 0.0
    %1185 = vmatpush1.msra.mxu0 0.0
    %1186 = vmatprep.subr.mxu0 0.0
    %1187 = vmatpush1.msra.mxu0 0.0
    %1188 = vmatprep.subr.mxu0 0.0
    %1189 = vmatpush1.msra.mxu0 0.0
    %1190 = vmatprep.subr.mxu0 0.0
    %1191 = vmatpush1.msra.mxu0 0.0
    %1192 = vmatprep.subr.mxu0 0.0
    %1193 = vmatpush1.msra.mxu0 0.0
    %1194 = vmatprep.subr.mxu0 0.0
    %1195 = vmatpush1.msra.mxu0 0.0
    %1196 = vmatprep.subr.mxu0 0.0
    %1197 = vmatpush1.msra.mxu0 0.0
    %1198 = vmatprep.subr.mxu0 0.0
    %1199 = vmatpush1.msra.mxu0 0.0
    %1200 = vmatprep.subr.mxu0 0.0
    %1201 = vmatpush1.msra.mxu0 0.0
    %1202 = vmatprep.subr.mxu0 0.0
    %1203 = vmatpush1.msra.mxu0 0.0
    %1204 = vmatprep.subr.mxu0 0.0
    %1205 = vmatpush1.msra.mxu0 0.0
    %1206 = vmatprep.subr.mxu0 0.0
    %1207 = vmatpush1.msra.mxu0 0.0
    %1208 = vmatprep.subr.mxu0 0.0
    %1209 = vmatpush1.msra.mxu0 0.0
    %1210 = vmatprep.subr.mxu0 0.0
    %1211 = vmatpush1.msra.mxu0 0.0
    %1212 = vmatprep.subr.mxu0 0.0
    %1213 = vmatpush1.msra.mxu0 0.0
    %1214 = vmatprep.subr.mxu0 0.0
    %1215 = vmatpush1.msra.mxu0 0.0
    %1216 = vmatprep.subr.mxu0 0.0
    %1217 = vmatpush1.msra.mxu0 0.0
    %1218 = vmatprep.subr.mxu0 0.0
    %1219 = vmatpush1.msra.mxu0 0.0
    %1220 = vmatprep.subr.mxu0 0.0
    %1221 = vmatpush1.msra.mxu0 0.0
    %1222 = vmatprep.subr.mxu0 0.0
    %1223 = vmatpush1.msra.mxu0 0.0
    %1224 = vmatprep.subr.mxu0 0.0
    %1225 = vmatpush1.msra.mxu0 0.0
    %1226 = vmatprep.subr.mxu0 0.0
    %1227 = vmatpush1.msra.mxu0 0.0
    %1228 = vmatprep.subr.mxu0 0.0
    %1229 = vmatpush1.msra.mxu0 0.0
    %1230 = vmatprep.subr.mxu0 0.0
    %1231 = vmatpush1.msra.mxu0 0.0
    %1232 = vmatprep.subr.mxu0 0.0
    %1233 = vmatpush1.msra.mxu0 0.0
    %1234 = vmatprep.subr.mxu0 0.0
    %1235 = vmatpush1.msra.mxu0 0.0
    %1236 = vmatprep.subr.mxu0 0.0
    %1237 = vmatpush1.msra.mxu0 0.0
    %1238 = vmatprep.mubr.f32.mxu0 0.0
    %1239 = vmatmul.mubr.f32.gmra.mrb[0].mxu0 %v1159
    %v1240 = vpop.f32.mrb[0].mxu0
    %v1241 = vadd.f32 0.0, %v1240
    %v1242 = vpop.f32.mrb[0].mxu0
    %v1243 = vadd.f32 0.0, %v1242
    %1244 = vdwg.mxu0
    %1245 = vmatprep.subr.mxu0 %v1172
    %1246 = vmatpush1.msra.mxu0 %v1169
    %1247 = vmatprep.subr.mxu0 0.0
    %1248 = vmatpush1.msra.mxu0 0.0
    %1249 = vmatprep.subr.mxu0 0.0
    %1250 = vmatpush1.msra.mxu0 0.0
    %1251 = vmatprep.subr.mxu0 0.0
    %1252 = vmatpush1.msra.mxu0 0.0
    %1253 = vmatprep.subr.mxu0 0.0
    %1254 = vmatpush1.msra.mxu0 0.0
    %1255 = vmatprep.subr.mxu0 0.0
    %1256 = vmatpush1.msra.mxu0 0.0
    %1257 = vmatprep.subr.mxu0 0.0
    %1258 = vmatpush1.msra.mxu0 0.0
    %1259 = vmatprep.subr.mxu0 0.0
    %1260 = vmatpush1.msra.mxu0 0.0
    %1261 = vmatprep.subr.mxu0 0.0
    %1262 = vmatpush1.msra.mxu0 0.0
    %1263 = vmatprep.subr.mxu0 0.0
    %1264 = vmatpush1.msra.mxu0 0.0
    %1265 = vmatprep.subr.mxu0 0.0
    %1266 = vmatpush1.msra.mxu0 0.0
    %1267 = vmatprep.subr.mxu0 0.0
    %1268 = vmatpush1.msra.mxu0 0.0
    %1269 = vmatprep.subr.mxu0 0.0
    %1270 = vmatpush1.msra.mxu0 0.0
    %1271 = vmatprep.subr.mxu0 0.0
    %1272 = vmatpush1.msra.mxu0 0.0
    %1273 = vmatprep.subr.mxu0 0.0
    %1274 = vmatpush1.msra.mxu0 0.0
    %1275 = vmatprep.subr.mxu0 0.0
    %1276 = vmatpush1.msra.mxu0 0.0
    %1277 = vmatprep.subr.mxu0 0.0
    %1278 = vmatpush1.msra.mxu0 0.0
    %1279 = vmatprep.subr.mxu0 0.0
    %1280 = vmatpush1.msra.mxu0 0.0
    %1281 = vmatprep.subr.mxu0 0.0
    %1282 = vmatpush1.msra.mxu0 0.0
    %1283 = vmatprep.subr.mxu0 0.0
    %1284 = vmatpush1.msra.mxu0 0.0
    %1285 = vmatprep.subr.mxu0 0.0
    %1286 = vmatpush1.msra.mxu0 0.0
    %1287 = vmatprep.subr.mxu0 0.0
    %1288 = vmatpush1.msra.mxu0 0.0
    %1289 = vmatprep.subr.mxu0 0.0
    %1290 = vmatpush1.msra.mxu0 0.0
    %1291 = vmatprep.subr.mxu0 0.0
    %1292 = vmatpush1.msra.mxu0 0.0
    %1293 = vmatprep.subr.mxu0 0.0
    %1294 = vmatpush1.msra.mxu0 0.0
    %1295 = vmatprep.subr.mxu0 0.0
    %1296 = vmatpush1.msra.mxu0 0.0
    %1297 = vmatprep.subr.mxu0 0.0
    %1298 = vmatpush1.msra.mxu0 0.0
    %1299 = vmatprep.subr.mxu0 0.0
    %1300 = vmatpush1.msra.mxu0 0.0
    %1301 = vmatprep.subr.mxu0 0.0
    %1302 = vmatpush1.msra.mxu0 0.0
    %1303 = vmatprep.subr.mxu0 0.0
    %1304 = vmatpush1.msra.mxu0 0.0
    %1305 = vmatprep.subr.mxu0 0.0
    %1306 = vmatpush1.msra.mxu0 0.0
    %1307 = vmatprep.subr.mxu0 0.0
    %1308 = vmatpush1.msra.mxu0 0.0
    %1309 = vmatprep.mubr.f32.mxu0 0.0
    %1310 = vmatmul.mubr.f32.gmra.mrb[0].mxu0 %v1159
    %v1311 = vpop.f32.mrb[0].mxu0
    %v1312 = vadd.f32 0.0, %v1311
    %v1313 = vpop.f32.mrb[0].mxu0
    %v1314 = vadd.f32 0.0, %v1313
    %1315 = vdwg.mxu0
    %v1316 = vmul.f32 %v1241, %v90
    %v1317 = vmul.f32 %v1243, %v94
    %v1318 = vmul.f32 %v1312, %v98
    %v1319 = vmul.f32 %v1314, %v102
    %v1320 = vmax.f32 %v1316, 0.0
    %v1321 = vmax.f32 %v1317, 0.0
    %v1322 = vmax.f32 %v1318, 0.0
    %v1323 = vmax.f32 %v1319, 0.0
    %v1324 = vmin.f32 %v1320, 1.0986123
    %v1325 = vmin.f32 %v1321, 1.0986123
    %v1326 = vmin.f32 %v1322, 1.0986123
    %v1327 = vmin.f32 %v1323, 1.0986123
    %v1328 = vmul.f32 %v1324, 1.442695
    %v1329 = vpow.pop %v1328
    %v1330 = vmul.f32 %v1325, 1.442695
    %v1331 = vpow.pop %v1330
    %v1332 = vmul.f32 %v1326, 1.442695
    %v1333 = vpow.pop %v1332
    %v1334 = vmul.f32 %v1327, 1.442695
    %v1335 = vpow.pop %v1334
    %vm1336 = vcmp.gt.f32.partialorder %v79, 0.0
    %vm1337 = vcmp.eq.f32.partialorder %v79, 0.0
    %v1338 = vsel %vm1337, 1, 0
    %v1339 = vcvt.s32.f32 %v1338
    %v1340 = vsel %vm1336, 1, 0
    %v1341 = vlaneseq
    %v1342 = vshrl.u32 %v1341, 7
    %v1343 = vsub.s32 0, %v1342
    %v1344 = vrot.slane %v1340, %v1343
    %v1345 = vlaneseq
    %v1346 = vshrl.u32 %v1345, 7
    %v1347 = vsub.s32 1, %v1346
    %v1348 = vrot.slane %v1340, %v1347
    %v1349 = vlaneseq
    %v1350 = vshrl.u32 %v1349, 7
    %v1351 = vsub.s32 2, %v1350
    %v1352 = vrot.slane %v1340, %v1351
    %v1353 = vlaneseq
    %v1354 = vshrl.u32 %v1353, 7
    %v1355 = vsub.s32 3, %v1354
    %v1356 = vrot.slane %v1340, %v1355
    %vm1357 = vcmp.eq.s32.totalorder %v1344, 1
    %vm1358 = vcmp.eq.s32.totalorder %v1348, 1
    %vm1359 = vcmp.eq.s32.totalorder %v1352, 1
    %vm1360 = vcmp.eq.s32.totalorder %v1356, 1
    %v1362 = vlaneseq
    %v1363 = vshrl.u32 %v1362, 7
    %v1364 = vsub.s32 0, %v1363
    %v1365 = vrot.slane %v1339, %v1364
    %v1366 = vlaneseq
    %v1367 = vshrl.u32 %v1366, 7
    %v1368 = vsub.s32 1, %v1367
    %v1369 = vrot.slane %v1339, %v1368
    %v1370 = vlaneseq
    %v1371 = vshrl.u32 %v1370, 7
    %v1372 = vsub.s32 2, %v1371
    %v1373 = vrot.slane %v1339, %v1372
    %v1374 = vlaneseq
    %v1375 = vshrl.u32 %v1374, 7
    %v1376 = vsub.s32 3, %v1375
    %v1377 = vrot.slane %v1339, %v1376
    %v1382 = vsel %vm1357, %v1329, %v1365
    %v1383 = vsel %vm1358, %v1331, %v1369
    %v1384 = vsel %vm1359, %v1333, %v1373
    %v1385 = vsel %vm1360, %v1335, %v1377
    %v1386 = vld [vmem:[#allocation5] sm:$0xff]
    %v1387 = vld [vmem:[#allocation5 + $0x8] sm:$0xff]
    %v1388 = vld [vmem:[#allocation5 + $0x10] sm:$0xff]
    %v1389 = vld [vmem:[#allocation5 + $0x18] sm:$0xff]
    %v1390 = vmul.f32 %v1382, %v1386
    %v1391 = vmul.f32 %v1383, %v1387
    %v1392 = vmul.f32 %v1384, %v1388
    %v1393 = vmul.f32 %v1385, %v1389
    %1394 = vset.pattern.permute.xlu0 6
    %1395 = vperm.xlu0 %1394, %v1156
    %v1396 = vpop.permute.xlu0 %1395
    %v1398 = vmul.f32 %v1390, %v1396
    %v1399 = vmul.f32 %v1391, %v1396
    %v1400 = vmul.f32 %v1392, %v1396
    %v1401 = vmul.f32 %v1393, %v1396
    %vm1402 = vcmp.ne.f32.partialorder %v1398, %v1398
    %vm1403 = vcmp.ne.f32.partialorder %v1399, %v1399
    %vm1404 = vcmp.ne.f32.partialorder %v1400, %v1400
    %vm1405 = vcmp.ne.f32.partialorder %v1401, %v1401
    %v1406 = vsel %vm1402, 0.0, %v1398
    %v1407 = vsel %vm1403, 0.0, %v1399
    %v1408 = vsel %vm1404, 0.0, %v1400
    %v1409 = vsel %vm1405, 0.0, %v1401
    %1410 = vst [vmem:[#allocation10] sm:$0xff] %v1382
    %1411 = vst [vmem:[#allocation10 + $0x8] sm:$0xff] %v1383
    %1412 = vst [vmem:[#allocation10 + $0x10] sm:$0xff] %v1384
    %1413 = vst [vmem:[#allocation10 + $0x18] sm:$0xff] %v1385
    %1414 = vst [vmem:[#allocation11] sm:$0xff] %v1406
    %1415 = vst [vmem:[#allocation11 + $0x8] sm:$0xff] %v1407
    %1416 = vst [vmem:[#allocation11 + $0x10] sm:$0xff] %v1408
    %1417 = vst [vmem:[#allocation11 + $0x18] sm:$0xff] %v1409
    // Predicated region
    $region46: #{tpu_custom_call.1} parent=1 // pred_check
      _
    $region47: #{tpu_custom_call.1} parent=1 // pred_check_branch
      %1419 = sbr.rel (0) target = $region49
    $region48: #{tpu_custom_call.1} parent=1 // pred_region
      %s1421 = ssub.s32 512, 512
      %1422 = vsyncadd [#allocation4], %s1421
      %s1424 = sshll.u32 [#allocation10], 4
      %s1425 = int_to_ptr.vmem [resolvable:$true] %s1424
      %1427 = dma.vmem_to_hbm [thread:$0]  %s1425, 512, %s7, [#allocation4]
    $region49: #{tpu_custom_call.1} parent=1 // pred_fallthru
      _
    // Predicated region
    $region50: #{tpu_custom_call.1} parent=1 // pred_check
      _
    $region51: #{tpu_custom_call.1} parent=1 // pred_check_branch
      %1429 = sbr.rel (0) target = $region53
    $region52: #{tpu_custom_call.1} parent=1 // pred_region
      %s1431 = ssub.s32 512, 512
      %1432 = vsyncadd [#allocation12], %s1431
      %s1434 = sshll.u32 [#allocation11], 4
      %s1435 = int_to_ptr.vmem [resolvable:$true] %s1434
      %1437 = dma.vmem_to_hbm [thread:$0]  %s1435, 512, %s8, [#allocation12]
    $region53: #{tpu_custom_call.1} parent=1 // pred_fallthru
      _
    // Predicated region
    $region54: #{tpu_custom_call.1} parent=1 // pred_check
      _
    $region55: #{tpu_custom_call.1} parent=1 // pred_check_branch
      %1439 = sbr.rel (0) target = $region57
    $region56: #{tpu_custom_call.1} parent=1 // pred_region
      %1440 = dma.done [#allocation4], 512
    $region57: #{tpu_custom_call.1} parent=1 // pred_fallthru
      _
    // Predicated region
    $region58: #{tpu_custom_call.1} parent=1 // pred_check
      _
    $region59: #{tpu_custom_call.1} parent=1 // pred_check_branch
      %1442 = sbr.rel (0) target = $region61
    $region60: #{tpu_custom_call.1} parent=1 // pred_region
      %1443 = dma.done [#allocation12], 512
    $region61: #{tpu_custom_call.1} parent=1 // pred_fallthru
      _
    %1444 = vsyncpa [#allocation3], 1
    %1445 = vsyncpa [#allocation6], 1
    %1446 = vsyncpa [#allocation9], 1
    %1447 = vsyncpa [#allocation4], 1
    %1448 = vsyncpa [#allocation12], 1

</llo_original>
